<compile_context>
chip_gen: v7x
topology: tpu7x:2x2x1
jax: 0.10.0
libtpu: 0.0.40
codegen_flags: <defaults>
</compile_context>

<pallas_src>
import math
import numpy as np
import jax
import jax.numpy as jnp
from jax.experimental import pallas as pl
from jax.experimental.pallas import tpu as pltpu

# --- small, Block-consistent config -----------------------------------------
B, T, C, NH = 2, 8, 32, 4          # batch, seq (block_size), n_embd, n_head
HD = C // NH                        # head dim
BT = B * T                          # flattened rows
SCALE = 1.0 / math.sqrt(HD)
INV_SQRT2 = 1.0 / math.sqrt(2.0)
NEG_BIAS = -1e30                    # finite "masked" bias (no exp(-inf) NaNs)


# --- Pallas kernel: whole Block forward, single invocation -------------------
def block_kernel(alpha_ref,        # SMEM (2,)   [alpha1, alpha2]
                 x_ref,            # VMEM (BT, C)
                 bias_ref,         # VMEM (BT, BT)  precomputed block-diag+causal bias
                 vec_ref,          # VMEM (8, 4C)   packed per-channel vectors
                 wqkv_ref,         # VMEM (C, 3C)
                 wpa_ref,          # VMEM (C, C)
                 wfc_ref,          # VMEM (C, 4C)
                 wpm_ref,          # VMEM (4C, C)
                 o_ref):           # VMEM (BT, C)
    x = x_ref[...]                                                  # (BT, C)

    # packed per-channel vectors: every slice starts at lane 0 -> no lane shifts
    g1    = vec_ref[0:1, :C]
    b1    = vec_ref[1:2, :C]
    g2    = vec_ref[2:3, :C]
    b2    = vec_ref[3:4, :C]
    b_pa  = vec_ref[4:5, :C]
    b_pm  = vec_ref[5:6, :C]
    b_qkv = vec_ref[6:7, :3 * C]
    b_fc  = vec_ref[7:8, :4 * C]

    # ---- DyT 1: gamma * tanh(alpha * x) + beta ----
    h = jnp.tanh(x * alpha_ref[0]) * g1 + b1                        # (BT, C)

    # ---- fused QKV projection: one 96-lane-wide MXU matmul ----
    qkv = jnp.dot(h, wqkv_ref[...],
                  preferred_element_type=jnp.float32) + b_qkv       # (BT, 3C)

    # per-head views (static lane slices), heads stacked on a leading batch axis
    qs = jnp.stack([qkv[:, 0 * C + hh * HD: 0 * C + (hh + 1) * HD] for hh in range(NH)])
    ks = jnp.stack([qkv[:, 1 * C + hh * HD: 1 * C + (hh + 1) * HD] for hh in range(NH)])
    vs = jnp.stack([qkv[:, 2 * C + hh * HD: 2 * C + (hh + 1) * HD] for hh in range(NH)])
    # each: (NH, BT, HD)

    # ---- causal multi-head attention (bias input handles batch + causality) ----
    s = jnp.einsum('hqd,hkd->hqk', qs, ks,
                   preferred_element_type=jnp.float32) * SCALE      # (NH, BT, BT)
    s = s + bias_ref[...]                                           # broadcast over heads
    m = jnp.max(s, axis=-1, keepdims=True)
    e = jnp.exp(s - m)
    p = e * pl.reciprocal(jnp.sum(e, axis=-1, keepdims=True), approx=True)   # EUP recip
    oh = jnp.einsum('hqk,hkd->hqd', p, vs,
                    preferred_element_type=jnp.float32)             # (NH, BT, HD)

    # concat heads -> single C-wide output projection (K = C = 32)
    o_cat = jnp.concatenate([oh[hh] for hh in range(NH)], axis=-1)  # (BT, C)
    attn = jnp.dot(o_cat, wpa_ref[...],
                   preferred_element_type=jnp.float32) + b_pa       # (BT, C)
    x1 = x + attn                                                   # residual 1

    # ---- DyT 2 ----
    h2 = jnp.tanh(x1 * alpha_ref[1]) * g2 + b2

    # ---- MLP: Linear -> exact GELU (erf, matches nn.GELU()) -> Linear ----
    u = jnp.dot(h2, wfc_ref[...],
                preferred_element_type=jnp.float32) + b_fc          # (BT, 4C)
    g = 0.5 * u * (1.0 + jax.lax.erf(u * INV_SQRT2))
    y = jnp.dot(g, wpm_ref[...],
                preferred_element_type=jnp.float32) + b_pm          # (BT, C)

    o_ref[...] = x1 + y                                             # residual 2


# --- wrapper ------------------------------------------------------------------
def _mask_bias():
    """Static block-diagonal (per-batch) + causal additive bias over flattened rows."""
    r = np.arange(BT)
    ok = ((r[:, None] // T) == (r[None, :] // T)) & (r[:, None] >= r[None, :])
    return jnp.asarray(np.where(ok, 0.0, NEG_BIAS).astype(np.float32))


def block_forward(x, params):
    xf = x.reshape(BT, C)

    # pack all small per-channel vectors into one lane-dense (8, 4C=128) slab (one DMA)
    def row(v):                                  # (1, n) -> (1, 4C), zero-padded
        return jnp.pad(v, ((0, 0), (0, 4 * C - v.shape[1])))
    vec = jnp.concatenate([
        row(params["g1"]), row(params["b1"]),
        row(params["g2"]), row(params["b2"]),
        row(params["b_pa"]), row(params["b_pm"]),
        row(params["b_attn"]), row(params["b_fc"]),
    ], axis=0)                                   # (8, 128)

    vmem = pl.BlockSpec(memory_space=pltpu.MemorySpace.VMEM)
    smem = pl.BlockSpec(memory_space=pltpu.MemorySpace.SMEM)

    out = pl.pallas_call(
        block_kernel,
        out_shape=jax.ShapeDtypeStruct((BT, C), jnp.float32),
        in_specs=[smem,                  # alphas
                  vmem,                  # x
                  vmem,                  # mask bias
                  vmem,                  # packed per-channel vectors
                  vmem, vmem, vmem, vmem],   # w_qkv, w_proj_attn, w_fc, w_proj_mlp
        out_specs=vmem,
    )(params["alphas"], xf, _mask_bias(), vec,
      params["w_attn"], params["w_pa"], params["w_fc"], params["w_pm"])
    return out.reshape(B, T, C)


# --- pure-JAX reference (mirrors the PyTorch forward) ------------------------
def ref_block(x, p):
    a1, a2 = p["alphas"][0], p["alphas"][1]
    h = jnp.tanh(x * a1) * p["g1"][0] + p["b1"][0]
    qkv = h @ p["w_attn"] + p["b_attn"][0]
    q, k, v = jnp.split(qkv, 3, axis=-1)
    q = q.reshape(B, T, NH, HD).transpose(0, 2, 1, 3)
    k = k.reshape(B, T, NH, HD).transpose(0, 2, 1, 3)
    v = v.reshape(B, T, NH, HD).transpose(0, 2, 1, 3)
    attn = jnp.einsum("bhqd,bhkd->bhqk", q, k) * SCALE
    mask = jnp.tril(jnp.ones((T, T), bool))
    attn = jnp.where(mask[None, None], attn, -jnp.inf)
    attn = jax.nn.softmax(attn, axis=-1)
    out = jnp.einsum("bhqk,bhkd->bhqd", attn, v)
    out = out.transpose(0, 2, 1, 3).reshape(B, T, C)
    out = out @ p["w_pa"] + p["b_pa"][0]
    x1 = x + out
    h2 = jnp.tanh(x1 * a2) * p["g2"][0] + p["b2"][0]
    u = h2 @ p["w_fc"] + p["b_fc"][0]
    g = 0.5 * u * (1.0 + jax.lax.erf(u / math.sqrt(2.0)))
    y = g @ p["w_pm"] + p["b_pm"][0]
    return x1 + y


def make_params(key):
    ks = jax.random.split(key, 12)
    n = lambda k, s, sc=0.02: (sc * jax.random.normal(k, s)).astype(jnp.float32)
    return {
        "alphas": jnp.array([0.5, 0.5], jnp.float32),              # DyT alpha1/2
        "g1": 1.0 + n(ks[0], (1, C), 0.1),
        "b1": n(ks[1], (1, C), 0.1),
        "w_attn": n(ks[2], (C, 3 * C)),
        "b_attn": n(ks[3], (1, 3 * C), 0.1),
        "w_pa": n(ks[4], (C, C)),
        "b_pa": n(ks[5], (1, C), 0.1),
        "g2": 1.0 + n(ks[6], (1, C), 0.1),
        "b2": n(ks[7], (1, C), 0.1),
        "w_fc": n(ks[8], (C, 4 * C)),
        "b_fc": n(ks[9], (1, 4 * C), 0.1),
        "w_pm": n(ks[10], (4 * C, C)),
        "b_pm": n(ks[11], (1, C), 0.1),
    }


if __name__ == "__main__":
    key = jax.random.PRNGKey(0)
    kx, kp = jax.random.split(key)
    x = jax.random.normal(kx, (B, T, C), jnp.float32)
    params = make_params(kp)

    out = jax.block_until_ready(block_forward(x, params))
    ref = ref_block(x, params)

    assert out.shape == (B, T, C)
    # tolerance slightly loosened vs pure-f32 because of pl.reciprocal(approx=True)
    assert jnp.allclose(out, ref, atol=1e-3, rtol=1e-3), (
        float(jnp.max(jnp.abs(out - ref))))
    print("KERNEL_OK")
</pallas_src>

<mosaic_0001>
module attributes {stable_mosaic.version = 11 : i64} {
  func.func @block_kernel(%arg0: memref<2xf32, #tpu.memory_space<smem>>, %arg1: memref<16x32xf32, #tpu.memory_space<vmem>>, %arg2: memref<16x16xf32, #tpu.memory_space<vmem>>, %arg3: memref<8x128xf32, #tpu.memory_space<vmem>>, %arg4: memref<32x96xf32, #tpu.memory_space<vmem>>, %arg5: memref<32x32xf32, #tpu.memory_space<vmem>>, %arg6: memref<32x128xf32, #tpu.memory_space<vmem>>, %arg7: memref<128x32xf32, #tpu.memory_space<vmem>>, %arg8: memref<16x32xf32, #tpu.memory_space<vmem>>) attributes {dimension_semantics = [], scalar_prefetch = 0 : i64, scratch_operands = 0 : i64, tpu.core_type = #tpu.core_type<tc>} {
    %c0 = arith.constant 0 : index
    %c0_0 = arith.constant 0 : index
    %0 = vector.load %arg1[%c0, %c0_0] : memref<16x32xf32, #tpu.memory_space<vmem>>, vector<16x32xf32>
    %c0_1 = arith.constant 0 : index
    %c0_2 = arith.constant 0 : index
    %1 = vector.load %arg3[%c0_1, %c0_2] : memref<8x128xf32, #tpu.memory_space<vmem>>, vector<1x32xf32>
    %c1 = arith.constant 1 : index
    %c0_3 = arith.constant 0 : index
    %2 = vector.load %arg3[%c1, %c0_3] : memref<8x128xf32, #tpu.memory_space<vmem>>, vector<1x32xf32>
    %c2 = arith.constant 2 : index
    %c0_4 = arith.constant 0 : index
    %3 = vector.load %arg3[%c2, %c0_4] : memref<8x128xf32, #tpu.memory_space<vmem>>, vector<1x32xf32>
    %c3 = arith.constant 3 : index
    %c0_5 = arith.constant 0 : index
    %4 = vector.load %arg3[%c3, %c0_5] : memref<8x128xf32, #tpu.memory_space<vmem>>, vector<1x32xf32>
    %c4 = arith.constant 4 : index
    %c0_6 = arith.constant 0 : index
    %5 = vector.load %arg3[%c4, %c0_6] : memref<8x128xf32, #tpu.memory_space<vmem>>, vector<1x32xf32>
    %c5 = arith.constant 5 : index
    %c0_7 = arith.constant 0 : index
    %6 = vector.load %arg3[%c5, %c0_7] : memref<8x128xf32, #tpu.memory_space<vmem>>, vector<1x32xf32>
    %c6 = arith.constant 6 : index
    %c0_8 = arith.constant 0 : index
    %7 = vector.load %arg3[%c6, %c0_8] : memref<8x128xf32, #tpu.memory_space<vmem>>, vector<1x96xf32>
    %c7 = arith.constant 7 : index
    %c0_9 = arith.constant 0 : index
    %8 = vector.load %arg3[%c7, %c0_9] : memref<8x128xf32, #tpu.memory_space<vmem>>, vector<1x128xf32>
    %c0_10 = arith.constant 0 : index
    %9 = memref.load %arg0[%c0_10] : memref<2xf32, #tpu.memory_space<smem>>
    %10 = vector.broadcast %9 : f32 to vector<16x32xf32>
    %11 = arith.mulf %0, %10 : vector<16x32xf32>
    %12 = math.tanh %11 : vector<16x32xf32>
    %13 = vector.broadcast %1 : vector<1x32xf32> to vector<16x32xf32>
    %14 = arith.mulf %12, %13 : vector<16x32xf32>
    %15 = vector.broadcast %2 : vector<1x32xf32> to vector<16x32xf32>
    %16 = arith.addf %14, %15 : vector<16x32xf32>
    %c0_11 = arith.constant 0 : index
    %c0_12 = arith.constant 0 : index
    %17 = vector.load %arg4[%c0_11, %c0_12] : memref<32x96xf32, #tpu.memory_space<vmem>>, vector<32x96xf32>
    %cst = arith.constant dense<0.000000e+00> : vector<16x96xf32>
    %18 = tpu.matmul %16, %17, %cst {dimension_numbers = #tpu.dot_dimension_numbers<[1], [0], [0], [1], [0, 0, 1, 1], [], []>} : vector<16x32xf32>, vector<32x96xf32>, vector<16x96xf32> -> vector<16x96xf32>
    %19 = vector.broadcast %7 : vector<1x96xf32> to vector<16x96xf32>
    %20 = arith.addf %18, %19 : vector<16x96xf32>
    %21 = vector.extract_strided_slice %20 {offsets = [0, 0], sizes = [16, 8], strides = [1, 1]} : vector<16x96xf32> to vector<16x8xf32>
    %22 = vector.extract_strided_slice %20 {offsets = [0, 8], sizes = [16, 8], strides = [1, 1]} : vector<16x96xf32> to vector<16x8xf32>
    %23 = vector.extract_strided_slice %20 {offsets = [0, 16], sizes = [16, 8], strides = [1, 1]} : vector<16x96xf32> to vector<16x8xf32>
    %24 = vector.extract_strided_slice %20 {offsets = [0, 24], sizes = [16, 8], strides = [1, 1]} : vector<16x96xf32> to vector<16x8xf32>
    %25 = vector.shape_cast %21 : vector<16x8xf32> to vector<1x16x8xf32>
    %26 = vector.shape_cast %22 : vector<16x8xf32> to vector<1x16x8xf32>
    %27 = vector.shape_cast %23 : vector<16x8xf32> to vector<1x16x8xf32>
    %28 = vector.shape_cast %24 : vector<16x8xf32> to vector<1x16x8xf32>
    %29 = tpu.concatenate %25, %26, %27, %28 in 0 : vector<1x16x8xf32>, vector<1x16x8xf32>, vector<1x16x8xf32>, vector<1x16x8xf32> -> vector<4x16x8xf32>
    %30 = vector.extract_strided_slice %20 {offsets = [0, 32], sizes = [16, 8], strides = [1, 1]} : vector<16x96xf32> to vector<16x8xf32>
    %31 = vector.extract_strided_slice %20 {offsets = [0, 40], sizes = [16, 8], strides = [1, 1]} : vector<16x96xf32> to vector<16x8xf32>
    %32 = vector.extract_strided_slice %20 {offsets = [0, 48], sizes = [16, 8], strides = [1, 1]} : vector<16x96xf32> to vector<16x8xf32>
    %33 = vector.extract_strided_slice %20 {offsets = [0, 56], sizes = [16, 8], strides = [1, 1]} : vector<16x96xf32> to vector<16x8xf32>
    %34 = vector.shape_cast %30 : vector<16x8xf32> to vector<1x16x8xf32>
    %35 = vector.shape_cast %31 : vector<16x8xf32> to vector<1x16x8xf32>
    %36 = vector.shape_cast %32 : vector<16x8xf32> to vector<1x16x8xf32>
    %37 = vector.shape_cast %33 : vector<16x8xf32> to vector<1x16x8xf32>
    %38 = tpu.concatenate %34, %35, %36, %37 in 0 : vector<1x16x8xf32>, vector<1x16x8xf32>, vector<1x16x8xf32>, vector<1x16x8xf32> -> vector<4x16x8xf32>
    %39 = vector.extract_strided_slice %20 {offsets = [0, 64], sizes = [16, 8], strides = [1, 1]} : vector<16x96xf32> to vector<16x8xf32>
    %40 = vector.extract_strided_slice %20 {offsets = [0, 72], sizes = [16, 8], strides = [1, 1]} : vector<16x96xf32> to vector<16x8xf32>
    %41 = vector.extract_strided_slice %20 {offsets = [0, 80], sizes = [16, 8], strides = [1, 1]} : vector<16x96xf32> to vector<16x8xf32>
    %42 = vector.extract_strided_slice %20 {offsets = [0, 88], sizes = [16, 8], strides = [1, 1]} : vector<16x96xf32> to vector<16x8xf32>
    %43 = vector.shape_cast %39 : vector<16x8xf32> to vector<1x16x8xf32>
    %44 = vector.shape_cast %40 : vector<16x8xf32> to vector<1x16x8xf32>
    %45 = vector.shape_cast %41 : vector<16x8xf32> to vector<1x16x8xf32>
    %46 = vector.shape_cast %42 : vector<16x8xf32> to vector<1x16x8xf32>
    %47 = tpu.concatenate %43, %44, %45, %46 in 0 : vector<1x16x8xf32>, vector<1x16x8xf32>, vector<1x16x8xf32>, vector<1x16x8xf32> -> vector<4x16x8xf32>
    "tpu.trace_start"() <{level = 10 : i32, message = "hqd,hkd->hqk"}> : () -> ()
    %cst_13 = arith.constant dense<0.000000e+00> : vector<4x16x16xf32>
    %48 = tpu.matmul %29, %38, %cst_13 {dimension_numbers = #tpu.dot_dimension_numbers<[2], [2], [1], [1], [0, 0, 0, 1, 1, 1], [0], [0]>} : vector<4x16x8xf32>, vector<4x16x8xf32>, vector<4x16x16xf32> -> vector<4x16x16xf32>
    "tpu.trace_stop"() : () -> ()
    %cst_14 = arith.constant 0.353553385 : f32
    %49 = vector.broadcast %cst_14 : f32 to vector<4x16x16xf32>
    %50 = arith.mulf %48, %49 : vector<4x16x16xf32>
    %c0_15 = arith.constant 0 : index
    %c0_16 = arith.constant 0 : index
    %51 = vector.load %arg2[%c0_15, %c0_16] : memref<16x16xf32, #tpu.memory_space<vmem>>, vector<16x16xf32>
    %52 = vector.shape_cast %51 : vector<16x16xf32> to vector<1x16x16xf32>
    %53 = vector.broadcast %52 : vector<1x16x16xf32> to vector<4x16x16xf32>
    %54 = arith.addf %50, %53 : vector<4x16x16xf32>
    %cst_17 = arith.constant dense<0xFF800000> : vector<4x16xf32>
    %55 = vector.multi_reduction <maximumf>, %54, %cst_17 [2] : vector<4x16x16xf32> to vector<4x16xf32>
    %56 = vector.shape_cast %55 : vector<4x16xf32> to vector<4x16x1xf32>
    %57 = vector.broadcast %56 : vector<4x16x1xf32> to vector<4x16x16xf32>
    %58 = arith.subf %54, %57 : vector<4x16x16xf32>
    %59 = math.exp %58 : vector<4x16x16xf32>
    %cst_18 = arith.constant dense<0.000000e+00> : vector<4x16xf32>
    %60 = vector.multi_reduction <add>, %59, %cst_18 [2] : vector<4x16x16xf32> to vector<4x16xf32>
    %61 = vector.shape_cast %60 : vector<4x16xf32> to vector<4x16x1xf32>
    %62 = tpu.reciprocal %61 {approx = true} : vector<4x16x1xf32> -> vector<4x16x1xf32>
    %63 = vector.broadcast %62 : vector<4x16x1xf32> to vector<4x16x16xf32>
    %64 = arith.mulf %59, %63 : vector<4x16x16xf32>
    "tpu.trace_start"() <{level = 10 : i32, message = "hqk,hkd->hqd"}> : () -> ()
    %cst_19 = arith.constant dense<0.000000e+00> : vector<4x16x8xf32>
    %65 = tpu.matmul %64, %47, %cst_19 {dimension_numbers = #tpu.dot_dimension_numbers<[2], [1], [1], [2], [0, 0, 0, 1, 1, 2], [0], [0]>} : vector<4x16x16xf32>, vector<4x16x8xf32>, vector<4x16x8xf32> -> vector<4x16x8xf32>
    "tpu.trace_stop"() : () -> ()
    %66 = vector.extract_strided_slice %65 {offsets = [0, 0, 0], sizes = [1, 16, 8], strides = [1, 1, 1]} : vector<4x16x8xf32> to vector<1x16x8xf32>
    %67 = vector.shape_cast %66 : vector<1x16x8xf32> to vector<16x8xf32>
    %68 = vector.extract_strided_slice %65 {offsets = [1, 0, 0], sizes = [1, 16, 8], strides = [1, 1, 1]} : vector<4x16x8xf32> to vector<1x16x8xf32>
    %69 = vector.shape_cast %68 : vector<1x16x8xf32> to vector<16x8xf32>
    %70 = vector.extract_strided_slice %65 {offsets = [2, 0, 0], sizes = [1, 16, 8], strides = [1, 1, 1]} : vector<4x16x8xf32> to vector<1x16x8xf32>
    %71 = vector.shape_cast %70 : vector<1x16x8xf32> to vector<16x8xf32>
    %72 = vector.extract_strided_slice %65 {offsets = [3, 0, 0], sizes = [1, 16, 8], strides = [1, 1, 1]} : vector<4x16x8xf32> to vector<1x16x8xf32>
    %73 = vector.shape_cast %72 : vector<1x16x8xf32> to vector<16x8xf32>
    %74 = tpu.concatenate %67, %69, %71, %73 in 1 : vector<16x8xf32>, vector<16x8xf32>, vector<16x8xf32>, vector<16x8xf32> -> vector<16x32xf32>
    %c0_20 = arith.constant 0 : index
    %c0_21 = arith.constant 0 : index
    %75 = vector.load %arg5[%c0_20, %c0_21] : memref<32x32xf32, #tpu.memory_space<vmem>>, vector<32x32xf32>
    %cst_22 = arith.constant dense<0.000000e+00> : vector<16x32xf32>
    %76 = tpu.matmul %74, %75, %cst_22 {dimension_numbers = #tpu.dot_dimension_numbers<[1], [0], [0], [1], [0, 0, 1, 1], [], []>} : vector<16x32xf32>, vector<32x32xf32>, vector<16x32xf32> -> vector<16x32xf32>
    %77 = vector.broadcast %5 : vector<1x32xf32> to vector<16x32xf32>
    %78 = arith.addf %76, %77 : vector<16x32xf32>
    %79 = arith.addf %0, %78 : vector<16x32xf32>
    %c1_23 = arith.constant 1 : index
    %80 = memref.load %arg0[%c1_23] : memref<2xf32, #tpu.memory_space<smem>>
    %81 = vector.broadcast %80 : f32 to vector<16x32xf32>
    %82 = arith.mulf %79, %81 : vector<16x32xf32>
    %83 = math.tanh %82 : vector<16x32xf32>
    %84 = vector.broadcast %3 : vector<1x32xf32> to vector<16x32xf32>
    %85 = arith.mulf %83, %84 : vector<16x32xf32>
    %86 = vector.broadcast %4 : vector<1x32xf32> to vector<16x32xf32>
    %87 = arith.addf %85, %86 : vector<16x32xf32>
    %c0_24 = arith.constant 0 : index
    %c0_25 = arith.constant 0 : index
    %88 = vector.load %arg6[%c0_24, %c0_25] : memref<32x128xf32, #tpu.memory_space<vmem>>, vector<32x128xf32>
    %cst_26 = arith.constant dense<0.000000e+00> : vector<16x128xf32>
    %89 = tpu.matmul %87, %88, %cst_26 {dimension_numbers = #tpu.dot_dimension_numbers<[1], [0], [0], [1], [0, 0, 1, 1], [], []>} : vector<16x32xf32>, vector<32x128xf32>, vector<16x128xf32> -> vector<16x128xf32>
    %90 = vector.broadcast %8 : vector<1x128xf32> to vector<16x128xf32>
    %91 = arith.addf %89, %90 : vector<16x128xf32>
    %cst_27 = arith.constant 5.000000e-01 : f32
    %92 = vector.broadcast %cst_27 : f32 to vector<16x128xf32>
    %93 = arith.mulf %92, %91 : vector<16x128xf32>
    %cst_28 = arith.constant 0.707106769 : f32
    %94 = vector.broadcast %cst_28 : f32 to vector<16x128xf32>
    %95 = arith.mulf %91, %94 : vector<16x128xf32>
    %96 = math.erf %95 : vector<16x128xf32>
    %cst_29 = arith.constant 1.000000e+00 : f32
    %97 = vector.broadcast %cst_29 : f32 to vector<16x128xf32>
    %98 = arith.addf %97, %96 : vector<16x128xf32>
    %99 = arith.mulf %93, %98 : vector<16x128xf32>
    %c0_30 = arith.constant 0 : index
    %c0_31 = arith.constant 0 : index
    %100 = vector.load %arg7[%c0_30, %c0_31] : memref<128x32xf32, #tpu.memory_space<vmem>>, vector<128x32xf32>
    %cst_32 = arith.constant dense<0.000000e+00> : vector<16x32xf32>
    %101 = tpu.matmul %99, %100, %cst_32 {dimension_numbers = #tpu.dot_dimension_numbers<[1], [0], [0], [1], [0, 0, 1, 1], [], []>} : vector<16x128xf32>, vector<128x32xf32>, vector<16x32xf32> -> vector<16x32xf32>
    %102 = vector.broadcast %6 : vector<1x32xf32> to vector<16x32xf32>
    %103 = arith.addf %101, %102 : vector<16x32xf32>
    %104 = arith.addf %79, %103 : vector<16x32xf32>
    %c0_33 = arith.constant 0 : index
    %c0_34 = arith.constant 0 : index
    %105 = vector.load %arg8[%c0_33, %c0_34] : memref<16x32xf32, #tpu.memory_space<vmem>>, vector<16x32xf32>
    tpu.vector_store %arg8[%c0_33, %c0_34], %104 {strides = array<i32>} : memref<16x32xf32, #tpu.memory_space<vmem>>, vector<16x32xf32>,
    return
  }
}

</mosaic_0001>

<llo_original>
// kernel: tpu_custom_call.1
$region0: #{tpu_custom_call.1}
  #allocation0 [shape = 'u32[]', space=smem, size = 0x4, offset = 0x4, fixed_abs, tag = 'smem constant byte address 0x4 - core index']
  #allocation1 [shape = 'u32[144,128]{1,0:T(1,128)}', space=vmem, size = 0x12000, scoped, tag = 'internal scratch']
  %s0 = inlined_call_operand.vmem [shape: f32[2], index: 0, kind: input, shape index: {}]
  %s1 = inlined_call_operand.vmem [shape: f32[16,32], index: 1, kind: input, shape index: {}]
  %s2 = inlined_call_operand.vmem [shape: f32[16,16], index: 2, kind: input, shape index: {}]
  %s3 = inlined_call_operand.vmem [shape: f32[8,128], index: 3, kind: input, shape index: {}]
  %s4 = inlined_call_operand.vmem [shape: f32[32,96], index: 4, kind: input, shape index: {}]
  %s5 = inlined_call_operand.vmem [shape: f32[32,32], index: 5, kind: input, shape index: {}]
  %s6 = inlined_call_operand.vmem [shape: f32[32,128], index: 6, kind: input, shape index: {}]
  %s7 = inlined_call_operand.vmem [shape: f32[128,32], index: 7, kind: input, shape index: {}]
  %s8 = inlined_call_operand.hbm [shape: f32[16,32], index: 8, kind: output, shape index: {}]
  %s9 = sld [smem:[#allocation0]]
  $region46: #{tpu_custom_call.1} parent=0
    _
  %s11 = ssub.s32 1, %s9
  %s12 = scalar_select 0, %s11, %s9
  $region1: #{tpu_custom_call.1} parent=0
    #allocation2 [shape = 'u8[512]{0}', space=smem, size = 0x200, scoped, tag = 'input window, operand 0, single buffered']
    #allocation3 [shape = 's32[1]{0}', space=sflag, size = 0x4, scoped, tag = 'scoped memory for tpu_custom_call.1']
    #allocation4 [shape = 's32[1]{0}', space=sflag, size = 0x4, scoped, tag = 'scoped memory for tpu_custom_call.1']
    #allocation5 [shape = 'u8[8192]{0}', space=vmem, size = 0x2000, scoped, tag = 'output window, operand 0, single buffered']
    %13 = vsyncpa [#allocation4], 0
    %14 = vsyncpa [#allocation3], 0
    // Predicated region
    $region2: #{tpu_custom_call.1} parent=1 // pred_check
      _
    $region3: #{tpu_custom_call.1} parent=1 // pred_check_branch
      %16 = sbr.rel (0) target = $region5
    $region4: #{tpu_custom_call.1} parent=1 // pred_region
      %s18 = ssub.s32 16, 16
      %19 = vsyncadd [#allocation4], %s18
      %s21 = sshll.u32 %s0, 4
      %s22 = int_to_ptr.vmem [resolvable:$true] %s21
      %24 = dma.vmem_to_smem %s22, 16, [#allocation2], [#allocation4]
    $region5: #{tpu_custom_call.1} parent=1 // pred_fallthru
      _
    // Predicated region
    $region6: #{tpu_custom_call.1} parent=1 // pred_check
      _
    $region7: #{tpu_custom_call.1} parent=1 // pred_check_branch
      %26 = sbr.rel (0) target = $region9
    $region8: #{tpu_custom_call.1} parent=1 // pred_region
      _
    $region9: #{tpu_custom_call.1} parent=1 // pred_fallthru
      _
    // Predicated region
    $region10: #{tpu_custom_call.1} parent=1 // pred_check
      _
    $region11: #{tpu_custom_call.1} parent=1 // pred_check_branch
      %28 = sbr.rel (0) target = $region13
    $region12: #{tpu_custom_call.1} parent=1 // pred_region
      _
    $region13: #{tpu_custom_call.1} parent=1 // pred_fallthru
      _
    // Predicated region
    $region14: #{tpu_custom_call.1} parent=1 // pred_check
      _
    $region15: #{tpu_custom_call.1} parent=1 // pred_check_branch
      %30 = sbr.rel (0) target = $region17
    $region16: #{tpu_custom_call.1} parent=1 // pred_region
      _
    $region17: #{tpu_custom_call.1} parent=1 // pred_fallthru
      _
    // Predicated region
    $region18: #{tpu_custom_call.1} parent=1 // pred_check
      _
    $region19: #{tpu_custom_call.1} parent=1 // pred_check_branch
      %32 = sbr.rel (0) target = $region21
    $region20: #{tpu_custom_call.1} parent=1 // pred_region
      _
    $region21: #{tpu_custom_call.1} parent=1 // pred_fallthru
      _
    // Predicated region
    $region22: #{tpu_custom_call.1} parent=1 // pred_check
      _
    $region23: #{tpu_custom_call.1} parent=1 // pred_check_branch
      %34 = sbr.rel (0) target = $region25
    $region24: #{tpu_custom_call.1} parent=1 // pred_region
      _
    $region25: #{tpu_custom_call.1} parent=1 // pred_fallthru
      _
    // Predicated region
    $region26: #{tpu_custom_call.1} parent=1 // pred_check
      _
    $region27: #{tpu_custom_call.1} parent=1 // pred_check_branch
      %36 = sbr.rel (0) target = $region29
    $region28: #{tpu_custom_call.1} parent=1 // pred_region
      _
    $region29: #{tpu_custom_call.1} parent=1 // pred_fallthru
      _
    // Predicated region
    $region30: #{tpu_custom_call.1} parent=1 // pred_check
      _
    $region31: #{tpu_custom_call.1} parent=1 // pred_check_branch
      %38 = sbr.rel (0) target = $region33
    $region32: #{tpu_custom_call.1} parent=1 // pred_region
      _
    $region33: #{tpu_custom_call.1} parent=1 // pred_fallthru
      _
    // Predicated region
    $region34: #{tpu_custom_call.1} parent=1 // pred_check
      _
    $region35: #{tpu_custom_call.1} parent=1 // pred_check_branch
      %40 = sbr.rel (0) target = $region37
    $region36: #{tpu_custom_call.1} parent=1 // pred_region
      %41 = dma.done [#allocation4], 16
    $region37: #{tpu_custom_call.1} parent=1 // pred_fallthru
      _
    %42 = sfence
    %v43 = vld [vmem:[%s1] sm:$0xff]
    %v44 = vld [vmem:[%s1 + $0x8] sm:$0xff]
    %v45 = vld [vmem:[%s3] sm:$0x1]
    %v46 = vld [vmem:[%s3 + $0x1] sm:$0x1]
    %v47 = vld [vmem:[%s3 + $0x2] sm:$0x1]
    %v48 = vld [vmem:[%s3 + $0x3] sm:$0x1]
    %v49 = vld [vmem:[%s3 + $0x4] sm:$0x1]
    %v50 = vld [vmem:[%s3 + $0x5] sm:$0x1]
    %v51 = vld [vmem:[%s3 + $0x6] sm:$0x1]
    %v52 = vld [vmem:[%s3 + $0x7] sm:$0x1]
    %s53 = sld [smem:[#allocation2]]
    %v54 = vstv %s53
    %v55 = vmul.f32 %v43, %v54
    %v56 = vmul.f32 %v44, %v54
    %v57 = vtanh.pop %v55
    %v58 = vtanh.pop %v56
    %v59 = vlaneseq
    %v60 = vshrl.u32 %v59, 7
    %v61 = vsub.s32 0, %v60
    %v62 = vrot.slane %v45, %v61
    %v63 = vmul.f32 %v57, %v62
    %v64 = vmul.f32 %v58, %v62
    %v65 = vlaneseq
    %v66 = vshrl.u32 %v65, 7
    %v67 = vsub.s32 0, %v66
    %v68 = vrot.slane %v46, %v67
    %v69 = vadd.f32 %v63, %v68
    %v70 = vadd.f32 %v64, %v68
    %v71 = vld [vmem:[%s4] sm:$0xff]
    %v72 = vld [vmem:[%s4 + $0x8] sm:$0xff]
    %v73 = vld [vmem:[%s4 + $0x10] sm:$0xff]
    %v74 = vld [vmem:[%s4 + $0x18] sm:$0xff]
    %v75 = vlaneseq
    %v76 = vshrl.u32 %v75, 7
    %v77 = vsub.s32 0, %v76
    %v78 = vrot.slane %v51, %v77
    %vm79 = vcmask 261120
    %v81 = vsel %vm79, %v69, 0
    %v84 = vsel %vm79, %v70, 0
    %86 = vmatprep.subr.mxu0 0.0
    %87 = vmatpush1.msra.mxu0 %v71
    %88 = vmatprep.subr.mxu0 0.0
    %89 = vmatpush1.msra.mxu0 %v72
    %90 = vmatprep.subr.mxu0 0.0
    %91 = vmatpush1.msra.mxu0 %v73
    %92 = vmatprep.subr.mxu0 0.0
    %93 = vmatpush1.msra.mxu0 %v74
    %94 = vmatprep.subr.mxu0 0.0
    %95 = vmatpush1.msra.mxu0 0.0
    %96 = vmatprep.subr.mxu0 0.0
    %97 = vmatpush1.msra.mxu0 0.0
    %98 = vmatprep.subr.mxu0 0.0
    %99 = vmatpush1.msra.mxu0 0.0
    %100 = vmatprep.subr.mxu0 0.0
    %101 = vmatpush1.msra.mxu0 0.0
    %102 = vmatprep.subr.mxu0 0.0
    %103 = vmatpush1.msra.mxu0 0.0
    %104 = vmatprep.subr.mxu0 0.0
    %105 = vmatpush1.msra.mxu0 0.0
    %106 = vmatprep.subr.mxu0 0.0
    %107 = vmatpush1.msra.mxu0 0.0
    %108 = vmatprep.subr.mxu0 0.0
    %109 = vmatpush1.msra.mxu0 0.0
    %110 = vmatprep.subr.mxu0 0.0
    %111 = vmatpush1.msra.mxu0 0.0
    %112 = vmatprep.subr.mxu0 0.0
    %113 = vmatpush1.msra.mxu0 0.0
    %114 = vmatprep.subr.mxu0 0.0
    %115 = vmatpush1.msra.mxu0 0.0
    %116 = vmatprep.subr.mxu0 0.0
    %117 = vmatpush1.msra.mxu0 0.0
    %118 = vmatprep.subr.mxu0 0.0
    %119 = vmatpush1.msra.mxu0 0.0
    %120 = vmatprep.subr.mxu0 0.0
    %121 = vmatpush1.msra.mxu0 0.0
    %122 = vmatprep.subr.mxu0 0.0
    %123 = vmatpush1.msra.mxu0 0.0
    %124 = vmatprep.subr.mxu0 0.0
    %125 = vmatpush1.msra.mxu0 0.0
    %126 = vmatprep.subr.mxu0 0.0
    %127 = vmatpush1.msra.mxu0 0.0
    %128 = vmatprep.subr.mxu0 0.0
    %129 = vmatpush1.msra.mxu0 0.0
    %130 = vmatprep.subr.mxu0 0.0
    %131 = vmatpush1.msra.mxu0 0.0
    %132 = vmatprep.subr.mxu0 0.0
    %133 = vmatpush1.msra.mxu0 0.0
    %134 = vmatprep.subr.mxu0 0.0
    %135 = vmatpush1.msra.mxu0 0.0
    %136 = vmatprep.subr.mxu0 0.0
    %137 = vmatpush1.msra.mxu0 0.0
    %138 = vmatprep.subr.mxu0 0.0
    %139 = vmatpush1.msra.mxu0 0.0
    %140 = vmatprep.subr.mxu0 0.0
    %141 = vmatpush1.msra.mxu0 0.0
    %142 = vmatprep.subr.mxu0 0.0
    %143 = vmatpush1.msra.mxu0 0.0
    %144 = vmatprep.subr.mxu0 0.0
    %145 = vmatpush1.msra.mxu0 0.0
    %146 = vmatprep.subr.mxu0 0.0
    %147 = vmatpush1.msra.mxu0 0.0
    %148 = vmatprep.subr.mxu0 0.0
    %149 = vmatpush1.msra.mxu0 0.0
    %150 = vmatprep.mubr.f32.mxu0 0.0
    %151 = vmatmul.mubr.f32.gmra.mrb[0].mxu0 %v81
    %v152 = vpop.f32.mrb[0].mxu0
    %v153 = vadd.f32 %v78, %v152
    %v154 = vpop.f32.mrb[0].mxu0
    %155 = vmatprep.mubr.f32.mxu0 0.0
    %156 = vmatmul.mubr.f32.gmra.mrb[0].mxu0 %v84
    %v157 = vpop.f32.mrb[0].mxu0
    %v158 = vadd.f32 %v78, %v157
    %v159 = vpop.f32.mrb[0].mxu0
    %160 = vdwg.mxu0
    %163 = vrot.lane.b32.xlu0 %v153, 120
    %v164 = vpop.permute.xlu0 %163
    %165 = vrot.lane.b32.xlu0 %v158, 120
    %v166 = vpop.permute.xlu0 %165
    %167 = vrot.lane.b32.xlu0 %v153, 112
    %v168 = vpop.permute.xlu0 %167
    %169 = vrot.lane.b32.xlu0 %v158, 112
    %v170 = vpop.permute.xlu0 %169
    %171 = vrot.lane.b32.xlu0 %v153, 104
    %v172 = vpop.permute.xlu0 %171
    %173 = vrot.lane.b32.xlu0 %v158, 104
    %v174 = vpop.permute.xlu0 %173
    %175 = vrot.lane.b32.xlu0 %v153, 96
    %v176 = vpop.permute.xlu0 %175
    %177 = vrot.lane.b32.xlu0 %v158, 96
    %v178 = vpop.permute.xlu0 %177
    %vm179 = vcmask 64512
    %v180 = vsel %vm179, %v153, 0
    %v182 = vsel %vm179, %v158, 0
    %v184 = vsel %vm179, %v176, 0
    %v186 = vsel %vm179, %v178, 0
    %188 = vmatprep.subr.mxu0 0.0
    %189 = vmatpush1.xpose.msra.mxu0 %v184
    %190 = vmatprep.subr.mxu0 0.0
    %191 = vmatpush1.xpose.msra.mxu0 %v186
    %192 = vmatprep.subr.mxu0 0.0
    %193 = vmatpush1.xpose.msra.mxu0 0.0
    %194 = vmatprep.subr.mxu0 0.0
    %195 = vmatpush1.xpose.msra.mxu0 0.0
    %196 = vmatprep.subr.mxu0 0.0
    %197 = vmatpush1.xpose.msra.mxu0 0.0
    %198 = vmatprep.subr.mxu0 0.0
    %199 = vmatpush1.xpose.msra.mxu0 0.0
    %200 = vmatprep.subr.mxu0 0.0
    %201 = vmatpush1.xpose.msra.mxu0 0.0
    %202 = vmatprep.subr.mxu0 0.0
    %203 = vmatpush1.xpose.msra.mxu0 0.0
    %204 = vmatprep.subr.mxu0 0.0
    %205 = vmatpush1.xpose.msra.mxu0 0.0
    %206 = vmatprep.subr.mxu0 0.0
    %207 = vmatpush1.xpose.msra.mxu0 0.0
    %208 = vmatprep.subr.mxu0 0.0
    %209 = vmatpush1.xpose.msra.mxu0 0.0
    %210 = vmatprep.subr.mxu0 0.0
    %211 = vmatpush1.xpose.msra.mxu0 0.0
    %212 = vmatprep.subr.mxu0 0.0
    %213 = vmatpush1.xpose.msra.mxu0 0.0
    %214 = vmatprep.subr.mxu0 0.0
    %215 = vmatpush1.xpose.msra.mxu0 0.0
    %216 = vmatprep.subr.mxu0 0.0
    %217 = vmatpush1.xpose.msra.mxu0 0.0
    %218 = vmatprep.subr.mxu0 0.0
    %219 = vmatpush1.xpose.msra.mxu0 0.0
    %220 = vmatprep.subr.mxu0 0.0
    %221 = vmatpush1.xpose.msra.mxu0 0.0
    %222 = vmatprep.subr.mxu0 0.0
    %223 = vmatpush1.xpose.msra.mxu0 0.0
    %224 = vmatprep.subr.mxu0 0.0
    %225 = vmatpush1.xpose.msra.mxu0 0.0
    %226 = vmatprep.subr.mxu0 0.0
    %227 = vmatpush1.xpose.msra.mxu0 0.0
    %228 = vmatprep.subr.mxu0 0.0
    %229 = vmatpush1.xpose.msra.mxu0 0.0
    %230 = vmatprep.subr.mxu0 0.0
    %231 = vmatpush1.xpose.msra.mxu0 0.0
    %232 = vmatprep.subr.mxu0 0.0
    %233 = vmatpush1.xpose.msra.mxu0 0.0
    %234 = vmatprep.subr.mxu0 0.0
    %235 = vmatpush1.xpose.msra.mxu0 0.0
    %236 = vmatprep.subr.mxu0 0.0
    %237 = vmatpush1.xpose.msra.mxu0 0.0
    %238 = vmatprep.subr.mxu0 0.0
    %239 = vmatpush1.xpose.msra.mxu0 0.0
    %240 = vmatprep.subr.mxu0 0.0
    %241 = vmatpush1.xpose.msra.mxu0 0.0
    %242 = vmatprep.subr.mxu0 0.0
    %243 = vmatpush1.xpose.msra.mxu0 0.0
    %244 = vmatprep.subr.mxu0 0.0
    %245 = vmatpush1.xpose.msra.mxu0 0.0
    %246 = vmatprep.subr.mxu0 0.0
    %247 = vmatpush1.xpose.msra.mxu0 0.0
    %248 = vmatprep.subr.mxu0 0.0
    %249 = vmatpush1.xpose.msra.mxu0 0.0
    %250 = vmatprep.subr.mxu0 0.0
    %251 = vmatpush1.xpose.msra.mxu0 0.0
    %252 = vmatprep.mubr.f32.mxu0 0.0
    %253 = vmatmul.mubr.f32.gmra.mrb[0].mxu0 %v180
    %v254 = vpop.f32.mrb[0].mxu0
    %v255 = vadd.f32 0.0, %v254
    %v256 = vpop.f32.mrb[0].mxu0
    %257 = vmatprep.mubr.f32.mxu0 0.0
    %258 = vmatmul.mubr.f32.gmra.mrb[0].mxu0 %v182
    %v259 = vpop.f32.mrb[0].mxu0
    %v260 = vadd.f32 0.0, %v259
    %v261 = vpop.f32.mrb[0].mxu0
    %262 = vdwg.mxu0
    %263 = vrot.lane.b32.xlu0 %v164, 96
    %v264 = vpop.permute.xlu0 %263
    %265 = vrot.lane.b32.xlu0 %v166, 96
    %v266 = vpop.permute.xlu0 %265
    %v267 = vsel %vm179, %v164, 0
    %v269 = vsel %vm179, %v166, 0
    %v271 = vsel %vm179, %v264, 0
    %v273 = vsel %vm179, %v266, 0
    %275 = vmatprep.subr.mxu0 0.0
    %276 = vmatpush1.xpose.msra.mxu0 %v271
    %277 = vmatprep.subr.mxu0 0.0
    %278 = vmatpush1.xpose.msra.mxu0 %v273
    %279 = vmatprep.subr.mxu0 0.0
    %280 = vmatpush1.xpose.msra.mxu0 0.0
    %281 = vmatprep.subr.mxu0 0.0
    %282 = vmatpush1.xpose.msra.mxu0 0.0
    %283 = vmatprep.subr.mxu0 0.0
    %284 = vmatpush1.xpose.msra.mxu0 0.0
    %285 = vmatprep.subr.mxu0 0.0
    %286 = vmatpush1.xpose.msra.mxu0 0.0
    %287 = vmatprep.subr.mxu0 0.0
    %288 = vmatpush1.xpose.msra.mxu0 0.0
    %289 = vmatprep.subr.mxu0 0.0
    %290 = vmatpush1.xpose.msra.mxu0 0.0
    %291 = vmatprep.subr.mxu0 0.0
    %292 = vmatpush1.xpose.msra.mxu0 0.0
    %293 = vmatprep.subr.mxu0 0.0
    %294 = vmatpush1.xpose.msra.mxu0 0.0
    %295 = vmatprep.subr.mxu0 0.0
    %296 = vmatpush1.xpose.msra.mxu0 0.0
    %297 = vmatprep.subr.mxu0 0.0
    %298 = vmatpush1.xpose.msra.mxu0 0.0
    %299 = vmatprep.subr.mxu0 0.0
    %300 = vmatpush1.xpose.msra.mxu0 0.0
    %301 = vmatprep.subr.mxu0 0.0
    %302 = vmatpush1.xpose.msra.mxu0 0.0
    %303 = vmatprep.subr.mxu0 0.0
    %304 = vmatpush1.xpose.msra.mxu0 0.0
    %305 = vmatprep.subr.mxu0 0.0
    %306 = vmatpush1.xpose.msra.mxu0 0.0
    %307 = vmatprep.subr.mxu0 0.0
    %308 = vmatpush1.xpose.msra.mxu0 0.0
    %309 = vmatprep.subr.mxu0 0.0
    %310 = vmatpush1.xpose.msra.mxu0 0.0
    %311 = vmatprep.subr.mxu0 0.0
    %312 = vmatpush1.xpose.msra.mxu0 0.0
    %313 = vmatprep.subr.mxu0 0.0
    %314 = vmatpush1.xpose.msra.mxu0 0.0
    %315 = vmatprep.subr.mxu0 0.0
    %316 = vmatpush1.xpose.msra.mxu0 0.0
    %317 = vmatprep.subr.mxu0 0.0
    %318 = vmatpush1.xpose.msra.mxu0 0.0
    %319 = vmatprep.subr.mxu0 0.0
    %320 = vmatpush1.xpose.msra.mxu0 0.0
    %321 = vmatprep.subr.mxu0 0.0
    %322 = vmatpush1.xpose.msra.mxu0 0.0
    %323 = vmatprep.subr.mxu0 0.0
    %324 = vmatpush1.xpose.msra.mxu0 0.0
    %325 = vmatprep.subr.mxu0 0.0
    %326 = vmatpush1.xpose.msra.mxu0 0.0
    %327 = vmatprep.subr.mxu0 0.0
    %328 = vmatpush1.xpose.msra.mxu0 0.0
    %329 = vmatprep.subr.mxu0 0.0
    %330 = vmatpush1.xpose.msra.mxu0 0.0
    %331 = vmatprep.subr.mxu0 0.0
    %332 = vmatpush1.xpose.msra.mxu0 0.0
    %333 = vmatprep.subr.mxu0 0.0
    %334 = vmatpush1.xpose.msra.mxu0 0.0
    %335 = vmatprep.subr.mxu0 0.0
    %336 = vmatpush1.xpose.msra.mxu0 0.0
    %337 = vmatprep.subr.mxu0 0.0
    %338 = vmatpush1.xpose.msra.mxu0 0.0
    %339 = vmatprep.mubr.f32.mxu0 0.0
    %340 = vmatmul.mubr.f32.gmra.mrb[0].mxu0 %v267
    %v341 = vpop.f32.mrb[0].mxu0
    %v342 = vadd.f32 0.0, %v341
    %v343 = vpop.f32.mrb[0].mxu0
    %344 = vmatprep.mubr.f32.mxu0 0.0
    %345 = vmatmul.mubr.f32.gmra.mrb[0].mxu0 %v269
    %v346 = vpop.f32.mrb[0].mxu0
    %v347 = vadd.f32 0.0, %v346
    %v348 = vpop.f32.mrb[0].mxu0
    %349 = vdwg.mxu0
    %350 = vrot.lane.b32.xlu0 %v168, 96
    %v351 = vpop.permute.xlu0 %350
    %352 = vrot.lane.b32.xlu0 %v170, 96
    %v353 = vpop.permute.xlu0 %352
    %v354 = vsel %vm179, %v168, 0
    %v356 = vsel %vm179, %v170, 0
    %v358 = vsel %vm179, %v351, 0
    %v360 = vsel %vm179, %v353, 0
    %362 = vmatprep.subr.mxu0 0.0
    %363 = vmatpush1.xpose.msra.mxu0 %v358
    %364 = vmatprep.subr.mxu0 0.0
    %365 = vmatpush1.xpose.msra.mxu0 %v360
    %366 = vmatprep.subr.mxu0 0.0
    %367 = vmatpush1.xpose.msra.mxu0 0.0
    %368 = vmatprep.subr.mxu0 0.0
    %369 = vmatpush1.xpose.msra.mxu0 0.0
    %370 = vmatprep.subr.mxu0 0.0
    %371 = vmatpush1.xpose.msra.mxu0 0.0
    %372 = vmatprep.subr.mxu0 0.0
    %373 = vmatpush1.xpose.msra.mxu0 0.0
    %374 = vmatprep.subr.mxu0 0.0
    %375 = vmatpush1.xpose.msra.mxu0 0.0
    %376 = vmatprep.subr.mxu0 0.0
    %377 = vmatpush1.xpose.msra.mxu0 0.0
    %378 = vmatprep.subr.mxu0 0.0
    %379 = vmatpush1.xpose.msra.mxu0 0.0
    %380 = vmatprep.subr.mxu0 0.0
    %381 = vmatpush1.xpose.msra.mxu0 0.0
    %382 = vmatprep.subr.mxu0 0.0
    %383 = vmatpush1.xpose.msra.mxu0 0.0
    %384 = vmatprep.subr.mxu0 0.0
    %385 = vmatpush1.xpose.msra.mxu0 0.0
    %386 = vmatprep.subr.mxu0 0.0
    %387 = vmatpush1.xpose.msra.mxu0 0.0
    %388 = vmatprep.subr.mxu0 0.0
    %389 = vmatpush1.xpose.msra.mxu0 0.0
    %390 = vmatprep.subr.mxu0 0.0
    %391 = vmatpush1.xpose.msra.mxu0 0.0
    %392 = vmatprep.subr.mxu0 0.0
    %393 = vmatpush1.xpose.msra.mxu0 0.0
    %394 = vmatprep.subr.mxu0 0.0
    %395 = vmatpush1.xpose.msra.mxu0 0.0
    %396 = vmatprep.subr.mxu0 0.0
    %397 = vmatpush1.xpose.msra.mxu0 0.0
    %398 = vmatprep.subr.mxu0 0.0
    %399 = vmatpush1.xpose.msra.mxu0 0.0
    %400 = vmatprep.subr.mxu0 0.0
    %401 = vmatpush1.xpose.msra.mxu0 0.0
    %402 = vmatprep.subr.mxu0 0.0
    %403 = vmatpush1.xpose.msra.mxu0 0.0
    %404 = vmatprep.subr.mxu0 0.0
    %405 = vmatpush1.xpose.msra.mxu0 0.0
    %406 = vmatprep.subr.mxu0 0.0
    %407 = vmatpush1.xpose.msra.mxu0 0.0
    %408 = vmatprep.subr.mxu0 0.0
    %409 = vmatpush1.xpose.msra.mxu0 0.0
    %410 = vmatprep.subr.mxu0 0.0
    %411 = vmatpush1.xpose.msra.mxu0 0.0
    %412 = vmatprep.subr.mxu0 0.0
    %413 = vmatpush1.xpose.msra.mxu0 0.0
    %414 = vmatprep.subr.mxu0 0.0
    %415 = vmatpush1.xpose.msra.mxu0 0.0
    %416 = vmatprep.subr.mxu0 0.0
    %417 = vmatpush1.xpose.msra.mxu0 0.0
    %418 = vmatprep.subr.mxu0 0.0
    %419 = vmatpush1.xpose.msra.mxu0 0.0
    %420 = vmatprep.subr.mxu0 0.0
    %421 = vmatpush1.xpose.msra.mxu0 0.0
    %422 = vmatprep.subr.mxu0 0.0
    %423 = vmatpush1.xpose.msra.mxu0 0.0
    %424 = vmatprep.subr.mxu0 0.0
    %425 = vmatpush1.xpose.msra.mxu0 0.0
    %426 = vmatprep.mubr.f32.mxu0 0.0
    %427 = vmatmul.mubr.f32.gmra.mrb[0].mxu0 %v354
    %v428 = vpop.f32.mrb[0].mxu0
    %v429 = vadd.f32 0.0, %v428
    %v430 = vpop.f32.mrb[0].mxu0
    %431 = vmatprep.mubr.f32.mxu0 0.0
    %432 = vmatmul.mubr.f32.gmra.mrb[0].mxu0 %v356
    %v433 = vpop.f32.mrb[0].mxu0
    %v434 = vadd.f32 0.0, %v433
    %v435 = vpop.f32.mrb[0].mxu0
    %436 = vdwg.mxu0
    %437 = vrot.lane.b32.xlu0 %v172, 96
    %v438 = vpop.permute.xlu0 %437
    %439 = vrot.lane.b32.xlu0 %v174, 96
    %v440 = vpop.permute.xlu0 %439
    %v441 = vsel %vm179, %v172, 0
    %v443 = vsel %vm179, %v174, 0
    %v445 = vsel %vm179, %v438, 0
    %v447 = vsel %vm179, %v440, 0
    %449 = vmatprep.subr.mxu0 0.0
    %450 = vmatpush1.xpose.msra.mxu0 %v445
    %451 = vmatprep.subr.mxu0 0.0
    %452 = vmatpush1.xpose.msra.mxu0 %v447
    %453 = vmatprep.subr.mxu0 0.0
    %454 = vmatpush1.xpose.msra.mxu0 0.0
    %455 = vmatprep.subr.mxu0 0.0
    %456 = vmatpush1.xpose.msra.mxu0 0.0
    %457 = vmatprep.subr.mxu0 0.0
    %458 = vmatpush1.xpose.msra.mxu0 0.0
    %459 = vmatprep.subr.mxu0 0.0
    %460 = vmatpush1.xpose.msra.mxu0 0.0
    %461 = vmatprep.subr.mxu0 0.0
    %462 = vmatpush1.xpose.msra.mxu0 0.0
    %463 = vmatprep.subr.mxu0 0.0
    %464 = vmatpush1.xpose.msra.mxu0 0.0
    %465 = vmatprep.subr.mxu0 0.0
    %466 = vmatpush1.xpose.msra.mxu0 0.0
    %467 = vmatprep.subr.mxu0 0.0
    %468 = vmatpush1.xpose.msra.mxu0 0.0
    %469 = vmatprep.subr.mxu0 0.0
    %470 = vmatpush1.xpose.msra.mxu0 0.0
    %471 = vmatprep.subr.mxu0 0.0
    %472 = vmatpush1.xpose.msra.mxu0 0.0
    %473 = vmatprep.subr.mxu0 0.0
    %474 = vmatpush1.xpose.msra.mxu0 0.0
    %475 = vmatprep.subr.mxu0 0.0
    %476 = vmatpush1.xpose.msra.mxu0 0.0
    %477 = vmatprep.subr.mxu0 0.0
    %478 = vmatpush1.xpose.msra.mxu0 0.0
    %479 = vmatprep.subr.mxu0 0.0
    %480 = vmatpush1.xpose.msra.mxu0 0.0
    %481 = vmatprep.subr.mxu0 0.0
    %482 = vmatpush1.xpose.msra.mxu0 0.0
    %483 = vmatprep.subr.mxu0 0.0
    %484 = vmatpush1.xpose.msra.mxu0 0.0
    %485 = vmatprep.subr.mxu0 0.0
    %486 = vmatpush1.xpose.msra.mxu0 0.0
    %487 = vmatprep.subr.mxu0 0.0
    %488 = vmatpush1.xpose.msra.mxu0 0.0
    %489 = vmatprep.subr.mxu0 0.0
    %490 = vmatpush1.xpose.msra.mxu0 0.0
    %491 = vmatprep.subr.mxu0 0.0
    %492 = vmatpush1.xpose.msra.mxu0 0.0
    %493 = vmatprep.subr.mxu0 0.0
    %494 = vmatpush1.xpose.msra.mxu0 0.0
    %495 = vmatprep.subr.mxu0 0.0
    %496 = vmatpush1.xpose.msra.mxu0 0.0
    %497 = vmatprep.subr.mxu0 0.0
    %498 = vmatpush1.xpose.msra.mxu0 0.0
    %499 = vmatprep.subr.mxu0 0.0
    %500 = vmatpush1.xpose.msra.mxu0 0.0
    %501 = vmatprep.subr.mxu0 0.0
    %502 = vmatpush1.xpose.msra.mxu0 0.0
    %503 = vmatprep.subr.mxu0 0.0
    %504 = vmatpush1.xpose.msra.mxu0 0.0
    %505 = vmatprep.subr.mxu0 0.0
    %506 = vmatpush1.xpose.msra.mxu0 0.0
    %507 = vmatprep.subr.mxu0 0.0
    %508 = vmatpush1.xpose.msra.mxu0 0.0
    %509 = vmatprep.subr.mxu0 0.0
    %510 = vmatpush1.xpose.msra.mxu0 0.0
    %511 = vmatprep.subr.mxu0 0.0
    %512 = vmatpush1.xpose.msra.mxu0 0.0
    %513 = vmatprep.mubr.f32.mxu0 0.0
    %514 = vmatmul.mubr.f32.gmra.mrb[0].mxu0 %v441
    %v515 = vpop.f32.mrb[0].mxu0
    %v516 = vadd.f32 0.0, %v515
    %v517 = vpop.f32.mrb[0].mxu0
    %518 = vmatprep.mubr.f32.mxu0 0.0
    %519 = vmatmul.mubr.f32.gmra.mrb[0].mxu0 %v443
    %v520 = vpop.f32.mrb[0].mxu0
    %v521 = vadd.f32 0.0, %v520
    %v522 = vpop.f32.mrb[0].mxu0
    %523 = vdwg.mxu0
    %v524 = vmul.f32 %v255, 0.35355338
    %v525 = vmul.f32 %v260, 0.35355338
    %v526 = vmul.f32 %v342, 0.35355338
    %v527 = vmul.f32 %v347, 0.35355338
    %v528 = vmul.f32 %v429, 0.35355338
    %v529 = vmul.f32 %v434, 0.35355338
    %v530 = vmul.f32 %v516, 0.35355338
    %v531 = vmul.f32 %v521, 0.35355338
    %v532 = vld [vmem:[%s2] sm:$0xff]
    %v533 = vld [vmem:[%s2 + $0x8] sm:$0xff]
    %v534 = vadd.f32 %v524, %v532
    %v535 = vadd.f32 %v525, %v533
    %v536 = vadd.f32 %v526, %v532
    %v537 = vadd.f32 %v527, %v533
    %v538 = vadd.f32 %v528, %v532
    %v539 = vadd.f32 %v529, %v533
    %v540 = vadd.f32 %v530, %v532
    %v541 = vadd.f32 %v531, %v533
    %vm542 = vcmask 130048
    %v543 = vsel %vm542, %v534, -inf
    %544 = vmax.xlane.f32.xlu0 %v543
    %v545 = vpop.xlane.xlu0 %544
    %v546 = vsel %vm542, %v535, -inf
    %547 = vmax.xlane.f32.xlu0 %v546
    %v548 = vpop.xlane.xlu0 %547
    %v549 = vsel %vm542, %v536, -inf
    %550 = vmax.xlane.f32.xlu0 %v549
    %v551 = vpop.xlane.xlu0 %550
    %v552 = vsel %vm542, %v537, -inf
    %553 = vmax.xlane.f32.xlu0 %v552
    %v554 = vpop.xlane.xlu0 %553
    %v555 = vsel %vm542, %v538, -inf
    %556 = vmax.xlane.f32.xlu0 %v555
    %v557 = vpop.xlane.xlu0 %556
    %v558 = vsel %vm542, %v539, -inf
    %559 = vmax.xlane.f32.xlu0 %v558
    %v560 = vpop.xlane.xlu0 %559
    %v561 = vsel %vm542, %v540, -inf
    %562 = vmax.xlane.f32.xlu0 %v561
    %v563 = vpop.xlane.xlu0 %562
    %v564 = vsel %vm542, %v541, -inf
    %565 = vmax.xlane.f32.xlu0 %v564
    %v566 = vpop.xlane.xlu0 %565
    %v567 = vsub.f32 %v534, %v545
    %v568 = vsub.f32 %v535, %v548
    %v569 = vsub.f32 %v536, %v551
    %v570 = vsub.f32 %v537, %v554
    %v571 = vsub.f32 %v538, %v557
    %v572 = vsub.f32 %v539, %v560
    %v573 = vsub.f32 %v540, %v563
    %v574 = vsub.f32 %v541, %v566
    %v575 = vmul.f32 %v567, 1.442695
    %v576 = vpow.pop %v575
    %v577 = vmul.f32 %v568, 1.442695
    %v578 = vpow.pop %v577
    %v579 = vmul.f32 %v569, 1.442695
    %v580 = vpow.pop %v579
    %v581 = vmul.f32 %v570, 1.442695
    %v582 = vpow.pop %v581
    %v583 = vmul.f32 %v571, 1.442695
    %v584 = vpow.pop %v583
    %v585 = vmul.f32 %v572, 1.442695
    %v586 = vpow.pop %v585
    %v587 = vmul.f32 %v573, 1.442695
    %v588 = vpow.pop %v587
    %v589 = vmul.f32 %v574, 1.442695
    %v590 = vpow.pop %v589
    %v591 = vsel %vm542, %v576, 0.0
    %592 = vadd.xlane.f32.xlu0 %v591
    %v593 = vpop.xlane.xlu0 %592
    %v594 = vsel %vm542, %v578, 0.0
    %595 = vadd.xlane.f32.xlu0 %v594
    %v596 = vpop.xlane.xlu0 %595
    %v597 = vsel %vm542, %v580, 0.0
    %598 = vadd.xlane.f32.xlu0 %v597
    %v599 = vpop.xlane.xlu0 %598
    %v600 = vsel %vm542, %v582, 0.0
    %601 = vadd.xlane.f32.xlu0 %v600
    %v602 = vpop.xlane.xlu0 %601
    %v603 = vsel %vm542, %v584, 0.0
    %604 = vadd.xlane.f32.xlu0 %v603
    %v605 = vpop.xlane.xlu0 %604
    %v606 = vsel %vm542, %v586, 0.0
    %607 = vadd.xlane.f32.xlu0 %v606
    %v608 = vpop.xlane.xlu0 %607
    %v609 = vsel %vm542, %v588, 0.0
    %610 = vadd.xlane.f32.xlu0 %v609
    %v611 = vpop.xlane.xlu0 %610
    %v612 = vsel %vm542, %v590, 0.0
    %613 = vadd.xlane.f32.xlu0 %v612
    %v614 = vpop.xlane.xlu0 %613
    %v615 = vrcp.pop %v593
    %v616 = vrcp.pop %v596
    %v617 = vrcp.pop %v599
    %v618 = vrcp.pop %v602
    %v619 = vrcp.pop %v605
    %v620 = vrcp.pop %v608
    %v621 = vrcp.pop %v611
    %v622 = vrcp.pop %v614
    %v623 = vmul.f32 %v576, %v615
    %v624 = vmul.f32 %v578, %v616
    %v625 = vmul.f32 %v580, %v617
    %v626 = vmul.f32 %v582, %v618
    %v627 = vmul.f32 %v584, %v619
    %v628 = vmul.f32 %v586, %v620
    %v629 = vmul.f32 %v588, %v621
    %v630 = vmul.f32 %v590, %v622
    %631 = vrot.lane.b32.xlu0 %v153, 64
    %v632 = vpop.permute.xlu0 %631
    %633 = vrot.lane.b32.xlu0 %v158, 64
    %v634 = vpop.permute.xlu0 %633
    %v638 = vsel %vm542, %v623, 0
    %v641 = vsel %vm542, %v624, 0
    %643 = vmatprep.subr.mxu0 0.0
    %644 = vmatpush1.msra.mxu0 %v632
    %645 = vmatprep.subr.mxu0 0.0
    %646 = vmatpush1.msra.mxu0 %v634
    %647 = vmatprep.subr.mxu0 0.0
    %648 = vmatpush1.msra.mxu0 0.0
    %649 = vmatprep.subr.mxu0 0.0
    %650 = vmatpush1.msra.mxu0 0.0
    %651 = vmatprep.subr.mxu0 0.0
    %652 = vmatpush1.msra.mxu0 0.0
    %653 = vmatprep.subr.mxu0 0.0
    %654 = vmatpush1.msra.mxu0 0.0
    %655 = vmatprep.subr.mxu0 0.0
    %656 = vmatpush1.msra.mxu0 0.0
    %657 = vmatprep.subr.mxu0 0.0
    %658 = vmatpush1.msra.mxu0 0.0
    %659 = vmatprep.subr.mxu0 0.0
    %660 = vmatpush1.msra.mxu0 0.0
    %661 = vmatprep.subr.mxu0 0.0
    %662 = vmatpush1.msra.mxu0 0.0
    %663 = vmatprep.subr.mxu0 0.0
    %664 = vmatpush1.msra.mxu0 0.0
    %665 = vmatprep.subr.mxu0 0.0
    %666 = vmatpush1.msra.mxu0 0.0
    %667 = vmatprep.subr.mxu0 0.0
    %668 = vmatpush1.msra.mxu0 0.0
    %669 = vmatprep.subr.mxu0 0.0
    %670 = vmatpush1.msra.mxu0 0.0
    %671 = vmatprep.subr.mxu0 0.0
    %672 = vmatpush1.msra.mxu0 0.0
    %673 = vmatprep.subr.mxu0 0.0
    %674 = vmatpush1.msra.mxu0 0.0
    %675 = vmatprep.subr.mxu0 0.0
    %676 = vmatpush1.msra.mxu0 0.0
    %677 = vmatprep.subr.mxu0 0.0
    %678 = vmatpush1.msra.mxu0 0.0
    %679 = vmatprep.subr.mxu0 0.0
    %680 = vmatpush1.msra.mxu0 0.0
    %681 = vmatprep.subr.mxu0 0.0
    %682 = vmatpush1.msra.mxu0 0.0
    %683 = vmatprep.subr.mxu0 0.0
    %684 = vmatpush1.msra.mxu0 0.0
    %685 = vmatprep.subr.mxu0 0.0
    %686 = vmatpush1.msra.mxu0 0.0
    %687 = vmatprep.subr.mxu0 0.0
    %688 = vmatpush1.msra.mxu0 0.0
    %689 = vmatprep.subr.mxu0 0.0
    %690 = vmatpush1.msra.mxu0 0.0
    %691 = vmatprep.subr.mxu0 0.0
    %692 = vmatpush1.msra.mxu0 0.0
    %693 = vmatprep.subr.mxu0 0.0
    %694 = vmatpush1.msra.mxu0 0.0
    %695 = vmatprep.subr.mxu0 0.0
    %696 = vmatpush1.msra.mxu0 0.0
    %697 = vmatprep.subr.mxu0 0.0
    %698 = vmatpush1.msra.mxu0 0.0
    %699 = vmatprep.subr.mxu0 0.0
    %700 = vmatpush1.msra.mxu0 0.0
    %701 = vmatprep.subr.mxu0 0.0
    %702 = vmatpush1.msra.mxu0 0.0
    %703 = vmatprep.subr.mxu0 0.0
    %704 = vmatpush1.msra.mxu0 0.0
    %705 = vmatprep.subr.mxu0 0.0
    %706 = vmatpush1.msra.mxu0 0.0
    %707 = vmatprep.mubr.f32.mxu0 0.0
    %708 = vmatmul.mubr.f32.gmra.mrb[0].mxu0 %v638
    %v709 = vpop.f32.mrb[0].mxu0
    %v710 = vadd.f32 0.0, %v709
    %v711 = vpop.f32.mrb[0].mxu0
    %712 = vmatprep.mubr.f32.mxu0 0.0
    %713 = vmatmul.mubr.f32.gmra.mrb[0].mxu0 %v641
    %v714 = vpop.f32.mrb[0].mxu0
    %v715 = vadd.f32 0.0, %v714
    %v716 = vpop.f32.mrb[0].mxu0
    %717 = vdwg.mxu0
    %718 = vrot.lane.b32.xlu0 %v164, 64
    %v719 = vpop.permute.xlu0 %718
    %720 = vrot.lane.b32.xlu0 %v166, 64
    %v721 = vpop.permute.xlu0 %720
    %v725 = vsel %vm542, %v625, 0
    %v728 = vsel %vm542, %v626, 0
    %730 = vmatprep.subr.mxu0 0.0
    %731 = vmatpush1.msra.mxu0 %v719
    %732 = vmatprep.subr.mxu0 0.0
    %733 = vmatpush1.msra.mxu0 %v721
    %734 = vmatprep.subr.mxu0 0.0
    %735 = vmatpush1.msra.mxu0 0.0
    %736 = vmatprep.subr.mxu0 0.0
    %737 = vmatpush1.msra.mxu0 0.0
    %738 = vmatprep.subr.mxu0 0.0
    %739 = vmatpush1.msra.mxu0 0.0
    %740 = vmatprep.subr.mxu0 0.0
    %741 = vmatpush1.msra.mxu0 0.0
    %742 = vmatprep.subr.mxu0 0.0
    %743 = vmatpush1.msra.mxu0 0.0
    %744 = vmatprep.subr.mxu0 0.0
    %745 = vmatpush1.msra.mxu0 0.0
    %746 = vmatprep.subr.mxu0 0.0
    %747 = vmatpush1.msra.mxu0 0.0
    %748 = vmatprep.subr.mxu0 0.0
    %749 = vmatpush1.msra.mxu0 0.0
    %750 = vmatprep.subr.mxu0 0.0
    %751 = vmatpush1.msra.mxu0 0.0
    %752 = vmatprep.subr.mxu0 0.0
    %753 = vmatpush1.msra.mxu0 0.0
    %754 = vmatprep.subr.mxu0 0.0
    %755 = vmatpush1.msra.mxu0 0.0
    %756 = vmatprep.subr.mxu0 0.0
    %757 = vmatpush1.msra.mxu0 0.0
    %758 = vmatprep.subr.mxu0 0.0
    %759 = vmatpush1.msra.mxu0 0.0
    %760 = vmatprep.subr.mxu0 0.0
    %761 = vmatpush1.msra.mxu0 0.0
    %762 = vmatprep.subr.mxu0 0.0
    %763 = vmatpush1.msra.mxu0 0.0
    %764 = vmatprep.subr.mxu0 0.0
    %765 = vmatpush1.msra.mxu0 0.0
    %766 = vmatprep.subr.mxu0 0.0
    %767 = vmatpush1.msra.mxu0 0.0
    %768 = vmatprep.subr.mxu0 0.0
    %769 = vmatpush1.msra.mxu0 0.0
    %770 = vmatprep.subr.mxu0 0.0
    %771 = vmatpush1.msra.mxu0 0.0
    %772 = vmatprep.subr.mxu0 0.0
    %773 = vmatpush1.msra.mxu0 0.0
    %774 = vmatprep.subr.mxu0 0.0
    %775 = vmatpush1.msra.mxu0 0.0
    %776 = vmatprep.subr.mxu0 0.0
    %777 = vmatpush1.msra.mxu0 0.0
    %778 = vmatprep.subr.mxu0 0.0
    %779 = vmatpush1.msra.mxu0 0.0
    %780 = vmatprep.subr.mxu0 0.0
    %781 = vmatpush1.msra.mxu0 0.0
    %782 = vmatprep.subr.mxu0 0.0
    %783 = vmatpush1.msra.mxu0 0.0
    %784 = vmatprep.subr.mxu0 0.0
    %785 = vmatpush1.msra.mxu0 0.0
    %786 = vmatprep.subr.mxu0 0.0
    %787 = vmatpush1.msra.mxu0 0.0
    %788 = vmatprep.subr.mxu0 0.0
    %789 = vmatpush1.msra.mxu0 0.0
    %790 = vmatprep.subr.mxu0 0.0
    %791 = vmatpush1.msra.mxu0 0.0
    %792 = vmatprep.subr.mxu0 0.0
    %793 = vmatpush1.msra.mxu0 0.0
    %794 = vmatprep.mubr.f32.mxu0 0.0
    %795 = vmatmul.mubr.f32.gmra.mrb[0].mxu0 %v725
    %v796 = vpop.f32.mrb[0].mxu0
    %v797 = vadd.f32 0.0, %v796
    %v798 = vpop.f32.mrb[0].mxu0
    %799 = vmatprep.mubr.f32.mxu0 0.0
    %800 = vmatmul.mubr.f32.gmra.mrb[0].mxu0 %v728
    %v801 = vpop.f32.mrb[0].mxu0
    %v802 = vadd.f32 0.0, %v801
    %v803 = vpop.f32.mrb[0].mxu0
    %804 = vdwg.mxu0
    %805 = vrot.lane.b32.xlu0 %v168, 64
    %v806 = vpop.permute.xlu0 %805
    %807 = vrot.lane.b32.xlu0 %v170, 64
    %v808 = vpop.permute.xlu0 %807
    %v812 = vsel %vm542, %v627, 0
    %v815 = vsel %vm542, %v628, 0
    %817 = vmatprep.subr.mxu0 0.0
    %818 = vmatpush1.msra.mxu0 %v806
    %819 = vmatprep.subr.mxu0 0.0
    %820 = vmatpush1.msra.mxu0 %v808
    %821 = vmatprep.subr.mxu0 0.0
    %822 = vmatpush1.msra.mxu0 0.0
    %823 = vmatprep.subr.mxu0 0.0
    %824 = vmatpush1.msra.mxu0 0.0
    %825 = vmatprep.subr.mxu0 0.0
    %826 = vmatpush1.msra.mxu0 0.0
    %827 = vmatprep.subr.mxu0 0.0
    %828 = vmatpush1.msra.mxu0 0.0
    %829 = vmatprep.subr.mxu0 0.0
    %830 = vmatpush1.msra.mxu0 0.0
    %831 = vmatprep.subr.mxu0 0.0
    %832 = vmatpush1.msra.mxu0 0.0
    %833 = vmatprep.subr.mxu0 0.0
    %834 = vmatpush1.msra.mxu0 0.0
    %835 = vmatprep.subr.mxu0 0.0
    %836 = vmatpush1.msra.mxu0 0.0
    %837 = vmatprep.subr.mxu0 0.0
    %838 = vmatpush1.msra.mxu0 0.0
    %839 = vmatprep.subr.mxu0 0.0
    %840 = vmatpush1.msra.mxu0 0.0
    %841 = vmatprep.subr.mxu0 0.0
    %842 = vmatpush1.msra.mxu0 0.0
    %843 = vmatprep.subr.mxu0 0.0
    %844 = vmatpush1.msra.mxu0 0.0
    %845 = vmatprep.subr.mxu0 0.0
    %846 = vmatpush1.msra.mxu0 0.0
    %847 = vmatprep.subr.mxu0 0.0
    %848 = vmatpush1.msra.mxu0 0.0
    %849 = vmatprep.subr.mxu0 0.0
    %850 = vmatpush1.msra.mxu0 0.0
    %851 = vmatprep.subr.mxu0 0.0
    %852 = vmatpush1.msra.mxu0 0.0
    %853 = vmatprep.subr.mxu0 0.0
    %854 = vmatpush1.msra.mxu0 0.0
    %855 = vmatprep.subr.mxu0 0.0
    %856 = vmatpush1.msra.mxu0 0.0
    %857 = vmatprep.subr.mxu0 0.0
    %858 = vmatpush1.msra.mxu0 0.0
    %859 = vmatprep.subr.mxu0 0.0
    %860 = vmatpush1.msra.mxu0 0.0
    %861 = vmatprep.subr.mxu0 0.0
    %862 = vmatpush1.msra.mxu0 0.0
    %863 = vmatprep.subr.mxu0 0.0
    %864 = vmatpush1.msra.mxu0 0.0
    %865 = vmatprep.subr.mxu0 0.0
    %866 = vmatpush1.msra.mxu0 0.0
    %867 = vmatprep.subr.mxu0 0.0
    %868 = vmatpush1.msra.mxu0 0.0
    %869 = vmatprep.subr.mxu0 0.0
    %870 = vmatpush1.msra.mxu0 0.0
    %871 = vmatprep.subr.mxu0 0.0
    %872 = vmatpush1.msra.mxu0 0.0
    %873 = vmatprep.subr.mxu0 0.0
    %874 = vmatpush1.msra.mxu0 0.0
    %875 = vmatprep.subr.mxu0 0.0
    %876 = vmatpush1.msra.mxu0 0.0
    %877 = vmatprep.subr.mxu0 0.0
    %878 = vmatpush1.msra.mxu0 0.0
    %879 = vmatprep.subr.mxu0 0.0
    %880 = vmatpush1.msra.mxu0 0.0
    %881 = vmatprep.mubr.f32.mxu0 0.0
    %882 = vmatmul.mubr.f32.gmra.mrb[0].mxu0 %v812
    %v883 = vpop.f32.mrb[0].mxu0
    %v884 = vadd.f32 0.0, %v883
    %v885 = vpop.f32.mrb[0].mxu0
    %886 = vmatprep.mubr.f32.mxu0 0.0
    %887 = vmatmul.mubr.f32.gmra.mrb[0].mxu0 %v815
    %v888 = vpop.f32.mrb[0].mxu0
    %v889 = vadd.f32 0.0, %v888
    %v890 = vpop.f32.mrb[0].mxu0
    %891 = vdwg.mxu0
    %892 = vrot.lane.b32.xlu0 %v172, 64
    %v893 = vpop.permute.xlu0 %892
    %894 = vrot.lane.b32.xlu0 %v174, 64
    %v895 = vpop.permute.xlu0 %894
    %v899 = vsel %vm542, %v629, 0
    %v902 = vsel %vm542, %v630, 0
    %904 = vmatprep.subr.mxu0 0.0
    %905 = vmatpush1.msra.mxu0 %v893
    %906 = vmatprep.subr.mxu0 0.0
    %907 = vmatpush1.msra.mxu0 %v895
    %908 = vmatprep.subr.mxu0 0.0
    %909 = vmatpush1.msra.mxu0 0.0
    %910 = vmatprep.subr.mxu0 0.0
    %911 = vmatpush1.msra.mxu0 0.0
    %912 = vmatprep.subr.mxu0 0.0
    %913 = vmatpush1.msra.mxu0 0.0
    %914 = vmatprep.subr.mxu0 0.0
    %915 = vmatpush1.msra.mxu0 0.0
    %916 = vmatprep.subr.mxu0 0.0
    %917 = vmatpush1.msra.mxu0 0.0
    %918 = vmatprep.subr.mxu0 0.0
    %919 = vmatpush1.msra.mxu0 0.0
    %920 = vmatprep.subr.mxu0 0.0
    %921 = vmatpush1.msra.mxu0 0.0
    %922 = vmatprep.subr.mxu0 0.0
    %923 = vmatpush1.msra.mxu0 0.0
    %924 = vmatprep.subr.mxu0 0.0
    %925 = vmatpush1.msra.mxu0 0.0
    %926 = vmatprep.subr.mxu0 0.0
    %927 = vmatpush1.msra.mxu0 0.0
    %928 = vmatprep.subr.mxu0 0.0
    %929 = vmatpush1.msra.mxu0 0.0
    %930 = vmatprep.subr.mxu0 0.0
    %931 = vmatpush1.msra.mxu0 0.0
    %932 = vmatprep.subr.mxu0 0.0
    %933 = vmatpush1.msra.mxu0 0.0
    %934 = vmatprep.subr.mxu0 0.0
    %935 = vmatpush1.msra.mxu0 0.0
    %936 = vmatprep.subr.mxu0 0.0
    %937 = vmatpush1.msra.mxu0 0.0
    %938 = vmatprep.subr.mxu0 0.0
    %939 = vmatpush1.msra.mxu0 0.0
    %940 = vmatprep.subr.mxu0 0.0
    %941 = vmatpush1.msra.mxu0 0.0
    %942 = vmatprep.subr.mxu0 0.0
    %943 = vmatpush1.msra.mxu0 0.0
    %944 = vmatprep.subr.mxu0 0.0
    %945 = vmatpush1.msra.mxu0 0.0
    %946 = vmatprep.subr.mxu0 0.0
    %947 = vmatpush1.msra.mxu0 0.0
    %948 = vmatprep.subr.mxu0 0.0
    %949 = vmatpush1.msra.mxu0 0.0
    %950 = vmatprep.subr.mxu0 0.0
    %951 = vmatpush1.msra.mxu0 0.0
    %952 = vmatprep.subr.mxu0 0.0
    %953 = vmatpush1.msra.mxu0 0.0
    %954 = vmatprep.subr.mxu0 0.0
    %955 = vmatpush1.msra.mxu0 0.0
    %956 = vmatprep.subr.mxu0 0.0
    %957 = vmatpush1.msra.mxu0 0.0
    %958 = vmatprep.subr.mxu0 0.0
    %959 = vmatpush1.msra.mxu0 0.0
    %960 = vmatprep.subr.mxu0 0.0
    %961 = vmatpush1.msra.mxu0 0.0
    %962 = vmatprep.subr.mxu0 0.0
    %963 = vmatpush1.msra.mxu0 0.0
    %964 = vmatprep.subr.mxu0 0.0
    %965 = vmatpush1.msra.mxu0 0.0
    %966 = vmatprep.subr.mxu0 0.0
    %967 = vmatpush1.msra.mxu0 0.0
    %968 = vmatprep.mubr.f32.mxu0 0.0
    %969 = vmatmul.mubr.f32.gmra.mrb[0].mxu0 %v899
    %v970 = vpop.f32.mrb[0].mxu0
    %v971 = vadd.f32 0.0, %v970
    %v972 = vpop.f32.mrb[0].mxu0
    %973 = vmatprep.mubr.f32.mxu0 0.0
    %974 = vmatmul.mubr.f32.gmra.mrb[0].mxu0 %v902
    %v975 = vpop.f32.mrb[0].mxu0
    %v976 = vadd.f32 0.0, %v975
    %v977 = vpop.f32.mrb[0].mxu0
    %978 = vdwg.mxu0
    %981 = vrot.lane.b32.xlu0 %v797, 8
    %v982 = vpop.permute.xlu0 %981
    %983 = vrot.lane.b32.xlu0 %v802, 8
    %v984 = vpop.permute.xlu0 %983
    %989 = vrot.lane.b32.xlu0 %v884, 16
    %v990 = vpop.permute.xlu0 %989
    %991 = vrot.lane.b32.xlu0 %v889, 16
    %v992 = vpop.permute.xlu0 %991
    %997 = vrot.lane.b32.xlu0 %v971, 24
    %v998 = vpop.permute.xlu0 %997
    %999 = vrot.lane.b32.xlu0 %v976, 24
    %v1000 = vpop.permute.xlu0 %999
    %v1003 = vsel %vm179, %v710, %v982
    %v1004 = vsel %vm179, %v715, %v984
    %v1005 = vsel %vm542, %v1003, %v990
    %v1006 = vsel %vm542, %v1004, %v992
    %vm1007 = vcmask 195584
    %v1008 = vsel %vm1007, %v1005, %v998
    %v1009 = vsel %vm1007, %v1006, %v1000
    %v1010 = vld [vmem:[%s5] sm:$0xff]
    %v1011 = vld [vmem:[%s5 + $0x8] sm:$0xff]
    %v1012 = vld [vmem:[%s5 + $0x10] sm:$0xff]
    %v1013 = vld [vmem:[%s5 + $0x18] sm:$0xff]
    %v1014 = vlaneseq
    %v1015 = vshrl.u32 %v1014, 7
    %v1016 = vsub.s32 0, %v1015
    %v1017 = vrot.slane %v49, %v1016
    %v1019 = vsel %vm79, %v1008, 0
    %v1022 = vsel %vm79, %v1009, 0
    %1024 = vmatprep.subr.mxu0 0.0
    %1025 = vmatpush1.msra.mxu0 %v1010
    %1026 = vmatprep.subr.mxu0 0.0
    %1027 = vmatpush1.msra.mxu0 %v1011
    %1028 = vmatprep.subr.mxu0 0.0
    %1029 = vmatpush1.msra.mxu0 %v1012
    %1030 = vmatprep.subr.mxu0 0.0
    %1031 = vmatpush1.msra.mxu0 %v1013
    %1032 = vmatprep.subr.mxu0 0.0
    %1033 = vmatpush1.msra.mxu0 0.0
    %1034 = vmatprep.subr.mxu0 0.0
    %1035 = vmatpush1.msra.mxu0 0.0
    %1036 = vmatprep.subr.mxu0 0.0
    %1037 = vmatpush1.msra.mxu0 0.0
    %1038 = vmatprep.subr.mxu0 0.0
    %1039 = vmatpush1.msra.mxu0 0.0
    %1040 = vmatprep.subr.mxu0 0.0
    %1041 = vmatpush1.msra.mxu0 0.0
    %1042 = vmatprep.subr.mxu0 0.0
    %1043 = vmatpush1.msra.mxu0 0.0
    %1044 = vmatprep.subr.mxu0 0.0
    %1045 = vmatpush1.msra.mxu0 0.0
    %1046 = vmatprep.subr.mxu0 0.0
    %1047 = vmatpush1.msra.mxu0 0.0
    %1048 = vmatprep.subr.mxu0 0.0
    %1049 = vmatpush1.msra.mxu0 0.0
    %1050 = vmatprep.subr.mxu0 0.0
    %1051 = vmatpush1.msra.mxu0 0.0
    %1052 = vmatprep.subr.mxu0 0.0
    %1053 = vmatpush1.msra.mxu0 0.0
    %1054 = vmatprep.subr.mxu0 0.0
    %1055 = vmatpush1.msra.mxu0 0.0
    %1056 = vmatprep.subr.mxu0 0.0
    %1057 = vmatpush1.msra.mxu0 0.0
    %1058 = vmatprep.subr.mxu0 0.0
    %1059 = vmatpush1.msra.mxu0 0.0
    %1060 = vmatprep.subr.mxu0 0.0
    %1061 = vmatpush1.msra.mxu0 0.0
    %1062 = vmatprep.subr.mxu0 0.0
    %1063 = vmatpush1.msra.mxu0 0.0
    %1064 = vmatprep.subr.mxu0 0.0
    %1065 = vmatpush1.msra.mxu0 0.0
    %1066 = vmatprep.subr.mxu0 0.0
    %1067 = vmatpush1.msra.mxu0 0.0
    %1068 = vmatprep.subr.mxu0 0.0
    %1069 = vmatpush1.msra.mxu0 0.0
    %1070 = vmatprep.subr.mxu0 0.0
    %1071 = vmatpush1.msra.mxu0 0.0
    %1072 = vmatprep.subr.mxu0 0.0
    %1073 = vmatpush1.msra.mxu0 0.0
    %1074 = vmatprep.subr.mxu0 0.0
    %1075 = vmatpush1.msra.mxu0 0.0
    %1076 = vmatprep.subr.mxu0 0.0
    %1077 = vmatpush1.msra.mxu0 0.0
    %1078 = vmatprep.subr.mxu0 0.0
    %1079 = vmatpush1.msra.mxu0 0.0
    %1080 = vmatprep.subr.mxu0 0.0
    %1081 = vmatpush1.msra.mxu0 0.0
    %1082 = vmatprep.subr.mxu0 0.0
    %1083 = vmatpush1.msra.mxu0 0.0
    %1084 = vmatprep.subr.mxu0 0.0
    %1085 = vmatpush1.msra.mxu0 0.0
    %1086 = vmatprep.subr.mxu0 0.0
    %1087 = vmatpush1.msra.mxu0 0.0
    %1088 = vmatprep.mubr.f32.mxu0 0.0
    %1089 = vmatmul.mubr.f32.gmra.mrb[0].mxu0 %v1019
    %v1090 = vpop.f32.mrb[0].mxu0
    %v1091 = vadd.f32 %v1017, %v1090
    %v1092 = vpop.f32.mrb[0].mxu0
    %1093 = vmatprep.mubr.f32.mxu0 0.0
    %1094 = vmatmul.mubr.f32.gmra.mrb[0].mxu0 %v1022
    %v1095 = vpop.f32.mrb[0].mxu0
    %v1096 = vadd.f32 %v1017, %v1095
    %v1097 = vpop.f32.mrb[0].mxu0
    %1098 = vdwg.mxu0
    %v1099 = vadd.f32 %v43, %v1091
    %v1100 = vadd.f32 %v44, %v1096
    %s1101 = sld [smem:[#allocation2 + $0x1]]
    %v1102 = vstv %s1101
    %v1103 = vmul.f32 %v1099, %v1102
    %v1104 = vmul.f32 %v1100, %v1102
    %v1105 = vtanh.pop %v1103
    %v1106 = vtanh.pop %v1104
    %v1107 = vlaneseq
    %v1108 = vshrl.u32 %v1107, 7
    %v1109 = vsub.s32 0, %v1108
    %v1110 = vrot.slane %v47, %v1109
    %v1111 = vmul.f32 %v1105, %v1110
    %v1112 = vmul.f32 %v1106, %v1110
    %v1113 = vlaneseq
    %v1114 = vshrl.u32 %v1113, 7
    %v1115 = vsub.s32 0, %v1114
    %v1116 = vrot.slane %v48, %v1115
    %v1117 = vadd.f32 %v1111, %v1116
    %v1118 = vadd.f32 %v1112, %v1116
    %v1119 = vld [vmem:[%s6] sm:$0xff]
    %v1120 = vld [vmem:[%s6 + $0x8] sm:$0xff]
    %v1121 = vld [vmem:[%s6 + $0x10] sm:$0xff]
    %v1122 = vld [vmem:[%s6 + $0x18] sm:$0xff]
    %v1123 = vlaneseq
    %v1124 = vshrl.u32 %v1123, 7
    %v1125 = vsub.s32 0, %v1124
    %v1126 = vrot.slane %v52, %v1125
    %v1128 = vsel %vm79, %v1117, 0
    %v1131 = vsel %vm79, %v1118, 0
    %1133 = vmatprep.subr.mxu0 0.0
    %1134 = vmatpush1.msra.mxu0 %v1119
    %1135 = vmatprep.subr.mxu0 0.0
    %1136 = vmatpush1.msra.mxu0 %v1120
    %1137 = vmatprep.subr.mxu0 0.0
    %1138 = vmatpush1.msra.mxu0 %v1121
    %1139 = vmatprep.subr.mxu0 0.0
    %1140 = vmatpush1.msra.mxu0 %v1122
    %1141 = vmatprep.subr.mxu0 0.0
    %1142 = vmatpush1.msra.mxu0 0.0
    %1143 = vmatprep.subr.mxu0 0.0
    %1144 = vmatpush1.msra.mxu0 0.0
    %1145 = vmatprep.subr.mxu0 0.0
    %1146 = vmatpush1.msra.mxu0 0.0
    %1147 = vmatprep.subr.mxu0 0.0
    %1148 = vmatpush1.msra.mxu0 0.0
    %1149 = vmatprep.subr.mxu0 0.0
    %1150 = vmatpush1.msra.mxu0 0.0
    %1151 = vmatprep.subr.mxu0 0.0
    %1152 = vmatpush1.msra.mxu0 0.0
    %1153 = vmatprep.subr.mxu0 0.0
    %1154 = vmatpush1.msra.mxu0 0.0
    %1155 = vmatprep.subr.mxu0 0.0
    %1156 = vmatpush1.msra.mxu0 0.0
    %1157 = vmatprep.subr.mxu0 0.0
    %1158 = vmatpush1.msra.mxu0 0.0
    %1159 = vmatprep.subr.mxu0 0.0
    %1160 = vmatpush1.msra.mxu0 0.0
    %1161 = vmatprep.subr.mxu0 0.0
    %1162 = vmatpush1.msra.mxu0 0.0
    %1163 = vmatprep.subr.mxu0 0.0
    %1164 = vmatpush1.msra.mxu0 0.0
    %1165 = vmatprep.subr.mxu0 0.0
    %1166 = vmatpush1.msra.mxu0 0.0
    %1167 = vmatprep.subr.mxu0 0.0
    %1168 = vmatpush1.msra.mxu0 0.0
    %1169 = vmatprep.subr.mxu0 0.0
    %1170 = vmatpush1.msra.mxu0 0.0
    %1171 = vmatprep.subr.mxu0 0.0
    %1172 = vmatpush1.msra.mxu0 0.0
    %1173 = vmatprep.subr.mxu0 0.0
    %1174 = vmatpush1.msra.mxu0 0.0
    %1175 = vmatprep.subr.mxu0 0.0
    %1176 = vmatpush1.msra.mxu0 0.0
    %1177 = vmatprep.subr.mxu0 0.0
    %1178 = vmatpush1.msra.mxu0 0.0
    %1179 = vmatprep.subr.mxu0 0.0
    %1180 = vmatpush1.msra.mxu0 0.0
    %1181 = vmatprep.subr.mxu0 0.0
    %1182 = vmatpush1.msra.mxu0 0.0
    %1183 = vmatprep.subr.mxu0 0.0
    %1184 = vmatpush1.msra.mxu0 0.0
    %1185 = vmatprep.subr.mxu0 0.0
    %1186 = vmatpush1.msra.mxu0 0.0
    %1187 = vmatprep.subr.mxu0 0.0
    %1188 = vmatpush1.msra.mxu0 0.0
    %1189 = vmatprep.subr.mxu0 0.0
    %1190 = vmatpush1.msra.mxu0 0.0
    %1191 = vmatprep.subr.mxu0 0.0
    %1192 = vmatpush1.msra.mxu0 0.0
    %1193 = vmatprep.subr.mxu0 0.0
    %1194 = vmatpush1.msra.mxu0 0.0
    %1195 = vmatprep.subr.mxu0 0.0
    %1196 = vmatpush1.msra.mxu0 0.0
    %1197 = vmatprep.mubr.f32.mxu0 0.0
    %1198 = vmatmul.mubr.f32.gmra.mrb[0].mxu0 %v1128
    %v1199 = vpop.f32.mrb[0].mxu0
    %v1200 = vadd.f32 %v1126, %v1199
    %v1201 = vpop.f32.mrb[0].mxu0
    %1202 = vmatprep.mubr.f32.mxu0 0.0
    %1203 = vmatmul.mubr.f32.gmra.mrb[0].mxu0 %v1131
    %v1204 = vpop.f32.mrb[0].mxu0
    %v1205 = vadd.f32 %v1126, %v1204
    %v1206 = vpop.f32.mrb[0].mxu0
    %1207 = vdwg.mxu0
    %v1208 = vmul.f32 %v1200, 0.5
    %v1209 = vmul.f32 %v1205, 0.5
    %v1210 = vmul.f32 %v1200, 0.70710677
    %v1211 = vmul.f32 %v1205, 0.70710677
    %v1212 = verf.f32.pop %v1210
    %v1213 = verf.f32.pop %v1211
    %v1214 = vadd.f32 %v1212, 1.0
    %v1215 = vadd.f32 %v1213, 1.0
    %v1216 = vmul.f32 %v1208, %v1214
    %v1217 = vmul.f32 %v1209, %v1215
    %v1218 = vld [vmem:[%s7] sm:$0xff]
    %v1219 = vld [vmem:[%s7 + $0x8] sm:$0xff]
    %v1220 = vld [vmem:[%s7 + $0x10] sm:$0xff]
    %v1221 = vld [vmem:[%s7 + $0x18] sm:$0xff]
    %v1222 = vld [vmem:[%s7 + $0x20] sm:$0xff]
    %v1223 = vld [vmem:[%s7 + $0x28] sm:$0xff]
    %v1224 = vld [vmem:[%s7 + $0x30] sm:$0xff]
    %v1225 = vld [vmem:[%s7 + $0x38] sm:$0xff]
    %v1226 = vld [vmem:[%s7 + $0x40] sm:$0xff]
    %v1227 = vld [vmem:[%s7 + $0x48] sm:$0xff]
    %v1228 = vld [vmem:[%s7 + $0x50] sm:$0xff]
    %v1229 = vld [vmem:[%s7 + $0x58] sm:$0xff]
    %v1230 = vld [vmem:[%s7 + $0x60] sm:$0xff]
    %v1231 = vld [vmem:[%s7 + $0x68] sm:$0xff]
    %v1232 = vld [vmem:[%s7 + $0x70] sm:$0xff]
    %v1233 = vld [vmem:[%s7 + $0x78] sm:$0xff]
    %v1234 = vlaneseq
    %v1235 = vshrl.u32 %v1234, 7
    %v1236 = vsub.s32 0, %v1235
    %v1237 = vrot.slane %v50, %v1236
    %1238 = vmatprep.subr.mxu0 0.0
    %1239 = vmatpush1.msra.mxu0 %v1218
    %1240 = vmatprep.subr.mxu0 0.0
    %1241 = vmatpush1.msra.mxu0 %v1219
    %1242 = vmatprep.subr.mxu0 0.0
    %1243 = vmatpush1.msra.mxu0 %v1220
    %1244 = vmatprep.subr.mxu0 0.0
    %1245 = vmatpush1.msra.mxu0 %v1221
    %1246 = vmatprep.subr.mxu0 0.0
    %1247 = vmatpush1.msra.mxu0 %v1222
    %1248 = vmatprep.subr.mxu0 0.0
    %1249 = vmatpush1.msra.mxu0 %v1223
    %1250 = vmatprep.subr.mxu0 0.0
    %1251 = vmatpush1.msra.mxu0 %v1224
    %1252 = vmatprep.subr.mxu0 0.0
    %1253 = vmatpush1.msra.mxu0 %v1225
    %1254 = vmatprep.subr.mxu0 0.0
    %1255 = vmatpush1.msra.mxu0 %v1226
    %1256 = vmatprep.subr.mxu0 0.0
    %1257 = vmatpush1.msra.mxu0 %v1227
    %1258 = vmatprep.subr.mxu0 0.0
    %1259 = vmatpush1.msra.mxu0 %v1228
    %1260 = vmatprep.subr.mxu0 0.0
    %1261 = vmatpush1.msra.mxu0 %v1229
    %1262 = vmatprep.subr.mxu0 0.0
    %1263 = vmatpush1.msra.mxu0 %v1230
    %1264 = vmatprep.subr.mxu0 0.0
    %1265 = vmatpush1.msra.mxu0 %v1231
    %1266 = vmatprep.subr.mxu0 0.0
    %1267 = vmatpush1.msra.mxu0 %v1232
    %1268 = vmatprep.subr.mxu0 0.0
    %1269 = vmatpush1.msra.mxu0 %v1233
    %1270 = vmatprep.subr.mxu0 0.0
    %1271 = vmatpush1.msra.mxu0 0.0
    %1272 = vmatprep.subr.mxu0 0.0
    %1273 = vmatpush1.msra.mxu0 0.0
    %1274 = vmatprep.subr.mxu0 0.0
    %1275 = vmatpush1.msra.mxu0 0.0
    %1276 = vmatprep.subr.mxu0 0.0
    %1277 = vmatpush1.msra.mxu0 0.0
    %1278 = vmatprep.subr.mxu0 0.0
    %1279 = vmatpush1.msra.mxu0 0.0
    %1280 = vmatprep.subr.mxu0 0.0
    %1281 = vmatpush1.msra.mxu0 0.0
    %1282 = vmatprep.subr.mxu0 0.0
    %1283 = vmatpush1.msra.mxu0 0.0
    %1284 = vmatprep.subr.mxu0 0.0
    %1285 = vmatpush1.msra.mxu0 0.0
    %1286 = vmatprep.subr.mxu0 0.0
    %1287 = vmatpush1.msra.mxu0 0.0
    %1288 = vmatprep.subr.mxu0 0.0
    %1289 = vmatpush1.msra.mxu0 0.0
    %1290 = vmatprep.subr.mxu0 0.0
    %1291 = vmatpush1.msra.mxu0 0.0
    %1292 = vmatprep.subr.mxu0 0.0
    %1293 = vmatpush1.msra.mxu0 0.0
    %1294 = vmatprep.subr.mxu0 0.0
    %1295 = vmatpush1.msra.mxu0 0.0
    %1296 = vmatprep.subr.mxu0 0.0
    %1297 = vmatpush1.msra.mxu0 0.0
    %1298 = vmatprep.subr.mxu0 0.0
    %1299 = vmatpush1.msra.mxu0 0.0
    %1300 = vmatprep.subr.mxu0 0.0
    %1301 = vmatpush1.msra.mxu0 0.0
    %1302 = vmatprep.mubr.f32.mxu0 0.0
    %1303 = vmatmul.mubr.f32.gmra.mrb[0].mxu0 %v1216
    %v1304 = vpop.f32.mrb[0].mxu0
    %v1305 = vadd.f32 %v1237, %v1304
    %v1306 = vpop.f32.mrb[0].mxu0
    %1307 = vmatprep.mubr.f32.mxu0 0.0
    %1308 = vmatmul.mubr.f32.gmra.mrb[0].mxu0 %v1217
    %v1309 = vpop.f32.mrb[0].mxu0
    %v1310 = vadd.f32 %v1237, %v1309
    %v1311 = vpop.f32.mrb[0].mxu0
    %1312 = vdwg.mxu0
    %v1313 = vadd.f32 %v1099, %v1305
    %v1314 = vadd.f32 %v1100, %v1310
    %1315 = vst.msk [vmem:[#allocation5] sm:$0xff] %vm79, %v1313
    %1316 = vst.msk [vmem:[#allocation5 + $0x8] sm:$0xff] %vm79, %v1314
    // Predicated region
    $region38: #{tpu_custom_call.1} parent=1 // pred_check
      _
    $region39: #{tpu_custom_call.1} parent=1 // pred_check_branch
      %1318 = sbr.rel (0) target = $region41
    $region40: #{tpu_custom_call.1} parent=1 // pred_region
      %s1320 = ssub.s32 256, 256
      %1321 = vsyncadd [#allocation3], %s1320
      %s1322 = sshll.u32 [#allocation5], 4
      %s1323 = int_to_ptr.vmem [resolvable:$true] %s1322
      %1328 = dma.vmem_to_hbm [thread:$0]  %s1323, 256, %s8, [#allocation3], 128, 128, 8
    $region41: #{tpu_custom_call.1} parent=1 // pred_fallthru
      _
    // Predicated region
    $region42: #{tpu_custom_call.1} parent=1 // pred_check
      _
    $region43: #{tpu_custom_call.1} parent=1 // pred_check_branch
      %1330 = sbr.rel (0) target = $region45
    $region44: #{tpu_custom_call.1} parent=1 // pred_region
      %1331 = dma.done [#allocation3], 256
    $region45: #{tpu_custom_call.1} parent=1 // pred_fallthru
      _
    %1332 = vsyncpa [#allocation3], 1
    %1333 = vsyncpa [#allocation4], 1

</llo_original>
